<compile_context>
chip_gen: v5e
topology: v5e:2x2
jax: 0.10.0
libtpu: 0.0.40
codegen_flags: <defaults>
</compile_context>

<pallas_src>
import jax
import jax.numpy as jnp
import numpy as np
from jax.experimental import pallas as pl
from jax.experimental.pallas import tpu as pltpu


def _make_dm_kernel(tb: int, n_ctx: int, n_smp: int):
    """Builds the kernel for a fixed (batch-block, context, sample) size."""

    def kernel(doc_ids_ref, ctx_ids_ref, smp_ids_ref,      # SMEM scalar prefetch
               par_hbm, word_hbm, out_hbm,                  # HBM (pl.ANY) tables
               res_ref,                                     # (1, tb, S) VMEM out
               par_buf, ctx_buf, smp_buf, sems):            # scratch
        blk = pl.program_id(0)

        # ---- gather: issue every row DMA for this batch block, then wait ----
        copies = []
        for b in range(tb):
            g = blk * tb + b
            copies.append(pltpu.make_async_copy(
                par_hbm.at[pl.ds(doc_ids_ref[g], 1)],        # (1, D) doc row
                par_buf.at[pl.ds(b, 1)],
                sems.at[b, 0]))
            for c in range(n_ctx):
                copies.append(pltpu.make_async_copy(
                    word_hbm.at[pl.ds(ctx_ids_ref[g, c], 1)],  # (1, D) context row
                    ctx_buf.at[b, pl.ds(c, 1)],
                    sems.at[b, 1 + c]))
            for s in range(n_smp):
                copies.append(pltpu.make_async_copy(
                    out_hbm.at[pl.ds(smp_ids_ref[g, s], 1)],   # (1, D) sample row
                    smp_buf.at[b, pl.ds(s, 1)],
                    sems.at[b, 1 + n_ctx + s]))
        for cp in copies:
            cp.start()
        for cp in copies:
            cp.wait()
        # TODO(synk): double-buffer the gathered rows across grid steps (prefetch
        # block i+1 while computing block i) to hide the gather-DMA latency.

        # ---- compute (VPU multiply + XLU lane reduce; no MXU for S<<128) ----
        inp = par_buf[...] + jnp.sum(ctx_buf[...], axis=1)          # (tb, D)
        res = jnp.sum(inp[:, None, :] * smp_buf[...], axis=-1)      # (tb, S)
        res_ref[0] = res.astype(res_ref.dtype)

    return kernel


def distributed_memory_forward(paragraph_matrix, word_matrix, outputs,
                               doc_ids, context_ids, sample_ids, *, batch_block=8):
    """Pallas forward pass.

    paragraph_matrix: (n_docs, D)  f32      word_matrix: (n_words, D) f32
    outputs:          (D, n_words) f32      (PyTorch parameter layout)
    doc_ids (B,), context_ids (B, C), sample_ids (B, S): int32
    returns (B, S) f32  (== torch bmm(...).squeeze() for B>1, S>1)
    """
    B, C = context_ids.shape
    S = sample_ids.shape[1]
    D = paragraph_matrix.shape[1]

    # Row-major output-embedding table: each sampled output vector is then one
    # contiguous 128-lane row.  TODO(synk): in a real port the parameter itself
    # would be stored (n_words, D) so this one-time transpose disappears.
    outputs_row = jnp.transpose(outputs)                             # (n_words, D)

    # Batch-block size: amortize per-grid-step overhead, but keep >= 2 grid steps
    # so the 'parallel' batch axis can be sharded across v7x's two TensorCores.
    tb = int(max(1, min(batch_block, B // 2 if B >= 2 else 1)))
    nblk = pl.cdiv(B, tb)
    b_pad = nblk * tb
    if b_pad != B:  # pad with id 0 (a valid row); padded results sliced off below
        pad = b_pad - B
        doc_ids = jnp.pad(doc_ids, (0, pad))
        context_ids = jnp.pad(context_ids, ((0, pad), (0, 0)))
        sample_ids = jnp.pad(sample_ids, ((0, pad), (0, 0)))
    doc_ids = doc_ids.astype(jnp.int32)
    context_ids = context_ids.astype(jnp.int32)
    sample_ids = sample_ids.astype(jnp.int32)

    # VMEM budget per grid step (gather buffers are not pipelined):
    #   (tb*D + tb*C*D + tb*S*D) * 4 B  ->  tens of KiB at these sizes, far under
    # the explicit 32 MiB scoped limit below (safe on v5e/v6e and v7x's 64 MiB VMEM).
    grid_spec = pltpu.PrefetchScalarGridSpec(
        num_scalar_prefetch=3,
        grid=(nblk,),
        in_specs=[pl.BlockSpec(memory_space=pl.ANY)] * 3,
        out_specs=pl.BlockSpec((1, tb, S), lambda blk, *_: (blk, 0, 0)),
        scratch_shapes=[
            pltpu.VMEM((tb, D), jnp.float32),        # gathered doc rows
            pltpu.VMEM((tb, C, D), jnp.float32),     # gathered context-word rows
            pltpu.VMEM((tb, S, D), jnp.float32),     # gathered sampled-output rows
            pltpu.SemaphoreType.DMA((tb, 1 + C + S)),
        ],
    )

    res = pl.pallas_call(
        _make_dm_kernel(tb, C, S),
        out_shape=jax.ShapeDtypeStruct((nblk, tb, S), jnp.float32),
        grid_spec=grid_spec,
        compiler_params=pltpu.CompilerParams(
            dimension_semantics=("parallel",),
            vmem_limit_bytes=32 * 1024 * 1024,
        ),
    )(doc_ids, context_ids, sample_ids,
      paragraph_matrix, word_matrix, outputs_row)

    # NOTE: with S (=8) << 128 the final store is lane-masked; at production sizes
    # one would pad S to a multiple of 128 (or put a >=128 batch tile on the lane
    # axis) per the review -- not meaningful at these demo shapes.
    return res.reshape(b_pad, S)[:B]


if __name__ == "__main__":
    key = jax.random.PRNGKey(0)
    vec_dim, n_docs, n_words = 128, 16, 64
    B, C, S = 4, 5, 8

    k1, k2, k3, k4, k5, k6 = jax.random.split(key, 6)
    # Parameter shapes follow DistributedMemory.__init__. The module inits
    # `outputs` to zeros; seeded randn here so the check is non-trivial.
    paragraph_matrix = jax.random.normal(k1, (n_docs, vec_dim), jnp.float32)
    word_matrix = jax.random.normal(k2, (n_words, vec_dim), jnp.float32)
    outputs = jax.random.normal(k3, (vec_dim, n_words), jnp.float32)

    doc_ids = jax.random.randint(k4, (B,), 0, n_docs, dtype=jnp.int32)
    context_ids = jax.random.randint(k5, (B, C), 0, n_words, dtype=jnp.int32)
    sample_ids = jax.random.randint(k6, (B, S), 0, n_words, dtype=jnp.int32)

    result = distributed_memory_forward(paragraph_matrix, word_matrix, outputs,
                                        doc_ids, context_ids, sample_ids)
    jax.block_until_ready(result)

    # Pure-JAX reference (mirrors the PyTorch forward exactly).
    inputs_ref = paragraph_matrix[doc_ids] + jnp.sum(word_matrix[context_ids], axis=1)
    ref = jnp.einsum("bd,bds->bs", inputs_ref,
                     jnp.transpose(outputs[:, sample_ids], (1, 0, 2)))

    assert result.shape == (B, S)
    np.testing.assert_allclose(np.asarray(result), np.asarray(ref),
                               rtol=1e-5, atol=1e-5)
    print("KERNEL_OK")
</pallas_src>

<mosaic_0001>
module attributes {stable_mosaic.version = 11 : i64} {
  func.func @kernel(%arg0: i32, %arg1: memref<4xi32, #tpu.memory_space<smem>>, %arg2: memref<4x5xi32, #tpu.memory_space<smem>>, %arg3: memref<4x8xi32, #tpu.memory_space<smem>>, %arg4: memref<16x128xf32, #tpu.memory_space<any>>, %arg5: memref<64x128xf32, #tpu.memory_space<any>>, %arg6: memref<64x128xf32, #tpu.memory_space<any>>, %arg7: memref<1x2x8xf32, #tpu.memory_space<vmem>>, %arg8: memref<2x128xf32, #tpu.memory_space<vmem>>, %arg9: memref<2x5x128xf32, #tpu.memory_space<vmem>>, %arg10: memref<2x8x128xf32, #tpu.memory_space<vmem>>, %arg11: memref<2x14x!tpu.dma_semaphore, #tpu.memory_space<semaphore_mem>>) attributes {dimension_semantics = [#tpu.dimension_semantics<parallel>], iteration_bounds = array<i64: 2>, scalar_prefetch = 3 : i64, scratch_operands = 4 : i64, tpu.core_type = #tpu.core_type<tc>, window_params = [{}, {}, {}, {transform_indices = @transform_3, window_bounds = array<i64: 1, 2, 8>}]} {
    %c2_i32 = arith.constant 2 : i32
    %0 = arith.muli %arg0, %c2_i32 : i32
    %c0_i32 = arith.constant 0 : i32
    %1 = arith.addi %0, %c0_i32 : i32
    %2 = arith.index_cast %1 : i32 to index
    %3 = memref.load %arg1[%2] : memref<4xi32, #tpu.memory_space<smem>>
    %4 = arith.index_cast %1 : i32 to index
    %c0 = arith.constant 0 : index
    %5 = memref.load %arg2[%4, %c0] : memref<4x5xi32, #tpu.memory_space<smem>>
    %6 = arith.index_cast %1 : i32 to index
    %c1 = arith.constant 1 : index
    %7 = memref.load %arg2[%6, %c1] : memref<4x5xi32, #tpu.memory_space<smem>>
    %8 = arith.index_cast %1 : i32 to index
    %c2 = arith.constant 2 : index
    %9 = memref.load %arg2[%8, %c2] : memref<4x5xi32, #tpu.memory_space<smem>>
    %10 = arith.index_cast %1 : i32 to index
    %c3 = arith.constant 3 : index
    %11 = memref.load %arg2[%10, %c3] : memref<4x5xi32, #tpu.memory_space<smem>>
    %12 = arith.index_cast %1 : i32 to index
    %c4 = arith.constant 4 : index
    %13 = memref.load %arg2[%12, %c4] : memref<4x5xi32, #tpu.memory_space<smem>>
    %14 = arith.index_cast %1 : i32 to index
    %c0_0 = arith.constant 0 : index
    %15 = memref.load %arg3[%14, %c0_0] : memref<4x8xi32, #tpu.memory_space<smem>>
    %16 = arith.index_cast %1 : i32 to index
    %c1_1 = arith.constant 1 : index
    %17 = memref.load %arg3[%16, %c1_1] : memref<4x8xi32, #tpu.memory_space<smem>>
    %18 = arith.index_cast %1 : i32 to index
    %c2_2 = arith.constant 2 : index
    %19 = memref.load %arg3[%18, %c2_2] : memref<4x8xi32, #tpu.memory_space<smem>>
    %20 = arith.index_cast %1 : i32 to index
    %c3_3 = arith.constant 3 : index
    %21 = memref.load %arg3[%20, %c3_3] : memref<4x8xi32, #tpu.memory_space<smem>>
    %22 = arith.index_cast %1 : i32 to index
    %c4_4 = arith.constant 4 : index
    %23 = memref.load %arg3[%22, %c4_4] : memref<4x8xi32, #tpu.memory_space<smem>>
    %24 = arith.index_cast %1 : i32 to index
    %c5 = arith.constant 5 : index
    %25 = memref.load %arg3[%24, %c5] : memref<4x8xi32, #tpu.memory_space<smem>>
    %26 = arith.index_cast %1 : i32 to index
    %c6 = arith.constant 6 : index
    %27 = memref.load %arg3[%26, %c6] : memref<4x8xi32, #tpu.memory_space<smem>>
    %28 = arith.index_cast %1 : i32 to index
    %c7 = arith.constant 7 : index
    %29 = memref.load %arg3[%28, %c7] : memref<4x8xi32, #tpu.memory_space<smem>>
    %c2_i32_5 = arith.constant 2 : i32
    %30 = arith.muli %arg0, %c2_i32_5 : i32
    %c1_i32 = arith.constant 1 : i32
    %31 = arith.addi %30, %c1_i32 : i32
    %32 = arith.index_cast %31 : i32 to index
    %33 = memref.load %arg1[%32] : memref<4xi32, #tpu.memory_space<smem>>
    %34 = arith.index_cast %31 : i32 to index
    %c0_6 = arith.constant 0 : index
    %35 = memref.load %arg2[%34, %c0_6] : memref<4x5xi32, #tpu.memory_space<smem>>
    %36 = arith.index_cast %31 : i32 to index
    %c1_7 = arith.constant 1 : index
    %37 = memref.load %arg2[%36, %c1_7] : memref<4x5xi32, #tpu.memory_space<smem>>
    %38 = arith.index_cast %31 : i32 to index
    %c2_8 = arith.constant 2 : index
    %39 = memref.load %arg2[%38, %c2_8] : memref<4x5xi32, #tpu.memory_space<smem>>
    %40 = arith.index_cast %31 : i32 to index
    %c3_9 = arith.constant 3 : index
    %41 = memref.load %arg2[%40, %c3_9] : memref<4x5xi32, #tpu.memory_space<smem>>
    %42 = arith.index_cast %31 : i32 to index
    %c4_10 = arith.constant 4 : index
    %43 = memref.load %arg2[%42, %c4_10] : memref<4x5xi32, #tpu.memory_space<smem>>
    %44 = arith.index_cast %31 : i32 to index
    %c0_11 = arith.constant 0 : index
    %45 = memref.load %arg3[%44, %c0_11] : memref<4x8xi32, #tpu.memory_space<smem>>
    %46 = arith.index_cast %31 : i32 to index
    %c1_12 = arith.constant 1 : index
    %47 = memref.load %arg3[%46, %c1_12] : memref<4x8xi32, #tpu.memory_space<smem>>
    %48 = arith.index_cast %31 : i32 to index
    %c2_13 = arith.constant 2 : index
    %49 = memref.load %arg3[%48, %c2_13] : memref<4x8xi32, #tpu.memory_space<smem>>
    %50 = arith.index_cast %31 : i32 to index
    %c3_14 = arith.constant 3 : index
    %51 = memref.load %arg3[%50, %c3_14] : memref<4x8xi32, #tpu.memory_space<smem>>
    %52 = arith.index_cast %31 : i32 to index
    %c4_15 = arith.constant 4 : index
    %53 = memref.load %arg3[%52, %c4_15] : memref<4x8xi32, #tpu.memory_space<smem>>
    %54 = arith.index_cast %31 : i32 to index
    %c5_16 = arith.constant 5 : index
    %55 = memref.load %arg3[%54, %c5_16] : memref<4x8xi32, #tpu.memory_space<smem>>
    %56 = arith.index_cast %31 : i32 to index
    %c6_17 = arith.constant 6 : index
    %57 = memref.load %arg3[%56, %c6_17] : memref<4x8xi32, #tpu.memory_space<smem>>
    %58 = arith.index_cast %31 : i32 to index
    %c7_18 = arith.constant 7 : index
    %59 = memref.load %arg3[%58, %c7_18] : memref<4x8xi32, #tpu.memory_space<smem>>
    %c0_i32_19 = arith.constant 0 : i32
    %c0_i32_20 = arith.constant 0 : i32
    %c0_i32_21 = arith.constant 0 : i32
    %60 = tpu.memref_slice %arg4[%3, %c0_i32_21] : memref<16x128xf32, #tpu.memory_space<any>> -> memref<1x128xf32, #tpu.memory_space<any>>
    %c0_i32_22 = arith.constant 0 : i32
    %c0_i32_23 = arith.constant 0 : i32
    %61 = tpu.memref_slice %arg8[%c0_i32_22, %c0_i32_23] : memref<2x128xf32, #tpu.memory_space<vmem>> -> memref<1x128xf32, #tpu.memory_space<vmem>>
    %62 = tpu.memref_slice %arg11[%c0_i32_19, %c0_i32_20] : memref<2x14x!tpu.dma_semaphore, #tpu.memory_space<semaphore_mem>> -> memref<1x1x!tpu.dma_semaphore, #tpu.memory_space<semaphore_mem>>
    %63 = tpu.memref_squeeze %62 : memref<1x1x!tpu.dma_semaphore, #tpu.memory_space<semaphore_mem>> -> memref<!tpu.dma_semaphore, #tpu.memory_space<semaphore_mem>>
    tpu.enqueue_dma source(%60 : memref<1x128xf32, #tpu.memory_space<any>>) target(%61 : memref<1x128xf32, #tpu.memory_space<vmem>>) target_semaphore(%63 : memref<!tpu.dma_semaphore, #tpu.memory_space<semaphore_mem>>)
    %c0_i32_24 = arith.constant 0 : i32
    %c0_i32_25 = arith.constant 0 : i32
    %c1_i32_26 = arith.constant 1 : i32
    %c0_i32_27 = arith.constant 0 : i32
    %64 = tpu.memref_slice %arg5[%5, %c0_i32_27] : memref<64x128xf32, #tpu.memory_space<any>> -> memref<1x128xf32, #tpu.memory_space<any>>
    %c0_i32_28 = arith.constant 0 : i32
    %c0_i32_29 = arith.constant 0 : i32
    %65 = tpu.memref_slice %arg9[%c0_i32_24, %c0_i32_28, %c0_i32_29] : memref<2x5x128xf32, #tpu.memory_space<vmem>> -> memref<1x1x128xf32, #tpu.memory_space<vmem>>
    %66 = tpu.memref_squeeze %65 : memref<1x1x128xf32, #tpu.memory_space<vmem>> -> memref<1x128xf32, #tpu.memory_space<vmem>>
    %67 = tpu.memref_slice %arg11[%c0_i32_25, %c1_i32_26] : memref<2x14x!tpu.dma_semaphore, #tpu.memory_space<semaphore_mem>> -> memref<1x1x!tpu.dma_semaphore, #tpu.memory_space<semaphore_mem>>
    %68 = tpu.memref_squeeze %67 : memref<1x1x!tpu.dma_semaphore, #tpu.memory_space<semaphore_mem>> -> memref<!tpu.dma_semaphore, #tpu.memory_space<semaphore_mem>>
    tpu.enqueue_dma source(%64 : memref<1x128xf32, #tpu.memory_space<any>>) target(%66 : memref<1x128xf32, #tpu.memory_space<vmem>>) target_semaphore(%68 : memref<!tpu.dma_semaphore, #tpu.memory_space<semaphore_mem>>)
    %c0_i32_30 = arith.constant 0 : i32
    %c0_i32_31 = arith.constant 0 : i32
    %c2_i32_32 = arith.constant 2 : i32
    %c0_i32_33 = arith.constant 0 : i32
    %69 = tpu.memref_slice %arg5[%7, %c0_i32_33] : memref<64x128xf32, #tpu.memory_space<any>> -> memref<1x128xf32, #tpu.memory_space<any>>
    %c1_i32_34 = arith.constant 1 : i32
    %c0_i32_35 = arith.constant 0 : i32
    %70 = tpu.memref_slice %arg9[%c0_i32_30, %c1_i32_34, %c0_i32_35] : memref<2x5x128xf32, #tpu.memory_space<vmem>> -> memref<1x1x128xf32, #tpu.memory_space<vmem>>
    %71 = tpu.memref_squeeze %70 : memref<1x1x128xf32, #tpu.memory_space<vmem>> -> memref<1x128xf32, #tpu.memory_space<vmem>>
    %72 = tpu.memref_slice %arg11[%c0_i32_31, %c2_i32_32] : memref<2x14x!tpu.dma_semaphore, #tpu.memory_space<semaphore_mem>> -> memref<1x1x!tpu.dma_semaphore, #tpu.memory_space<semaphore_mem>>
    %73 = tpu.memref_squeeze %72 : memref<1x1x!tpu.dma_semaphore, #tpu.memory_space<semaphore_mem>> -> memref<!tpu.dma_semaphore, #tpu.memory_space<semaphore_mem>>
    tpu.enqueue_dma source(%69 : memref<1x128xf32, #tpu.memory_space<any>>) target(%71 : memref<1x128xf32, #tpu.memory_space<vmem>>) target_semaphore(%73 : memref<!tpu.dma_semaphore, #tpu.memory_space<semaphore_mem>>)
    %c0_i32_36 = arith.constant 0 : i32
    %c0_i32_37 = arith.constant 0 : i32
    %c3_i32 = arith.constant 3 : i32
    %c0_i32_38 = arith.constant 0 : i32
    %74 = tpu.memref_slice %arg5[%9, %c0_i32_38] : memref<64x128xf32, #tpu.memory_space<any>> -> memref<1x128xf32, #tpu.memory_space<any>>
    %c2_i32_39 = arith.constant 2 : i32
    %c0_i32_40 = arith.constant 0 : i32
    %75 = tpu.memref_slice %arg9[%c0_i32_36, %c2_i32_39, %c0_i32_40] : memref<2x5x128xf32, #tpu.memory_space<vmem>> -> memref<1x1x128xf32, #tpu.memory_space<vmem>>
    %76 = tpu.memref_squeeze %75 : memref<1x1x128xf32, #tpu.memory_space<vmem>> -> memref<1x128xf32, #tpu.memory_space<vmem>>
    %77 = tpu.memref_slice %arg11[%c0_i32_37, %c3_i32] : memref<2x14x!tpu.dma_semaphore, #tpu.memory_space<semaphore_mem>> -> memref<1x1x!tpu.dma_semaphore, #tpu.memory_space<semaphore_mem>>
    %78 = tpu.memref_squeeze %77 : memref<1x1x!tpu.dma_semaphore, #tpu.memory_space<semaphore_mem>> -> memref<!tpu.dma_semaphore, #tpu.memory_space<semaphore_mem>>
    tpu.enqueue_dma source(%74 : memref<1x128xf32, #tpu.memory_space<any>>) target(%76 : memref<1x128xf32, #tpu.memory_space<vmem>>) target_semaphore(%78 : memref<!tpu.dma_semaphore, #tpu.memory_space<semaphore_mem>>)
    %c0_i32_41 = arith.constant 0 : i32
    %c0_i32_42 = arith.constant 0 : i32
    %c4_i32 = arith.constant 4 : i32
    %c0_i32_43 = arith.constant 0 : i32
    %79 = tpu.memref_slice %arg5[%11, %c0_i32_43] : memref<64x128xf32, #tpu.memory_space<any>> -> memref<1x128xf32, #tpu.memory_space<any>>
    %c3_i32_44 = arith.constant 3 : i32
    %c0_i32_45 = arith.constant 0 : i32
    %80 = tpu.memref_slice %arg9[%c0_i32_41, %c3_i32_44, %c0_i32_45] : memref<2x5x128xf32, #tpu.memory_space<vmem>> -> memref<1x1x128xf32, #tpu.memory_space<vmem>>
    %81 = tpu.memref_squeeze %80 : memref<1x1x128xf32, #tpu.memory_space<vmem>> -> memref<1x128xf32, #tpu.memory_space<vmem>>
    %82 = tpu.memref_slice %arg11[%c0_i32_42, %c4_i32] : memref<2x14x!tpu.dma_semaphore, #tpu.memory_space<semaphore_mem>> -> memref<1x1x!tpu.dma_semaphore, #tpu.memory_space<semaphore_mem>>
    %83 = tpu.memref_squeeze %82 : memref<1x1x!tpu.dma_semaphore, #tpu.memory_space<semaphore_mem>> -> memref<!tpu.dma_semaphore, #tpu.memory_space<semaphore_mem>>
    tpu.enqueue_dma source(%79 : memref<1x128xf32, #tpu.memory_space<any>>) target(%81 : memref<1x128xf32, #tpu.memory_space<vmem>>) target_semaphore(%83 : memref<!tpu.dma_semaphore, #tpu.memory_space<semaphore_mem>>)
    %c0_i32_46 = arith.constant 0 : i32
    %c0_i32_47 = arith.constant 0 : i32
    %c5_i32 = arith.constant 5 : i32
    %c0_i32_48 = arith.constant 0 : i32
    %84 = tpu.memref_slice %arg5[%13, %c0_i32_48] : memref<64x128xf32, #tpu.memory_space<any>> -> memref<1x128xf32, #tpu.memory_space<any>>
    %c4_i32_49 = arith.constant 4 : i32
    %c0_i32_50 = arith.constant 0 : i32
    %85 = tpu.memref_slice %arg9[%c0_i32_46, %c4_i32_49, %c0_i32_50] : memref<2x5x128xf32, #tpu.memory_space<vmem>> -> memref<1x1x128xf32, #tpu.memory_space<vmem>>
    %86 = tpu.memref_squeeze %85 : memref<1x1x128xf32, #tpu.memory_space<vmem>> -> memref<1x128xf32, #tpu.memory_space<vmem>>
    %87 = tpu.memref_slice %arg11[%c0_i32_47, %c5_i32] : memref<2x14x!tpu.dma_semaphore, #tpu.memory_space<semaphore_mem>> -> memref<1x1x!tpu.dma_semaphore, #tpu.memory_space<semaphore_mem>>
    %88 = tpu.memref_squeeze %87 : memref<1x1x!tpu.dma_semaphore, #tpu.memory_space<semaphore_mem>> -> memref<!tpu.dma_semaphore, #tpu.memory_space<semaphore_mem>>
    tpu.enqueue_dma source(%84 : memref<1x128xf32, #tpu.memory_space<any>>) target(%86 : memref<1x128xf32, #tpu.memory_space<vmem>>) target_semaphore(%88 : memref<!tpu.dma_semaphore, #tpu.memory_space<semaphore_mem>>)
    %c0_i32_51 = arith.constant 0 : i32
    %c0_i32_52 = arith.constant 0 : i32
    %c6_i32 = arith.constant 6 : i32
    %c0_i32_53 = arith.constant 0 : i32
    %89 = tpu.memref_slice %arg6[%15, %c0_i32_53] : memref<64x128xf32, #tpu.memory_space<any>> -> memref<1x128xf32, #tpu.memory_space<any>>
    %c0_i32_54 = arith.constant 0 : i32
    %c0_i32_55 = arith.constant 0 : i32
    %90 = tpu.memref_slice %arg10[%c0_i32_51, %c0_i32_54, %c0_i32_55] : memref<2x8x128xf32, #tpu.memory_space<vmem>> -> memref<1x1x128xf32, #tpu.memory_space<vmem>>
    %91 = tpu.memref_squeeze %90 : memref<1x1x128xf32, #tpu.memory_space<vmem>> -> memref<1x128xf32, #tpu.memory_space<vmem>>
    %92 = tpu.memref_slice %arg11[%c0_i32_52, %c6_i32] : memref<2x14x!tpu.dma_semaphore, #tpu.memory_space<semaphore_mem>> -> memref<1x1x!tpu.dma_semaphore, #tpu.memory_space<semaphore_mem>>
    %93 = tpu.memref_squeeze %92 : memref<1x1x!tpu.dma_semaphore, #tpu.memory_space<semaphore_mem>> -> memref<!tpu.dma_semaphore, #tpu.memory_space<semaphore_mem>>
    tpu.enqueue_dma source(%89 : memref<1x128xf32, #tpu.memory_space<any>>) target(%91 : memref<1x128xf32, #tpu.memory_space<vmem>>) target_semaphore(%93 : memref<!tpu.dma_semaphore, #tpu.memory_space<semaphore_mem>>)
    %c0_i32_56 = arith.constant 0 : i32
    %c0_i32_57 = arith.constant 0 : i32
    %c7_i32 = arith.constant 7 : i32
    %c0_i32_58 = arith.constant 0 : i32
    %94 = tpu.memref_slice %arg6[%17, %c0_i32_58] : memref<64x128xf32, #tpu.memory_space<any>> -> memref<1x128xf32, #tpu.memory_space<any>>
    %c1_i32_59 = arith.constant 1 : i32
    %c0_i32_60 = arith.constant 0 : i32
    %95 = tpu.memref_slice %arg10[%c0_i32_56, %c1_i32_59, %c0_i32_60] : memref<2x8x128xf32, #tpu.memory_space<vmem>> -> memref<1x1x128xf32, #tpu.memory_space<vmem>>
    %96 = tpu.memref_squeeze %95 : memref<1x1x128xf32, #tpu.memory_space<vmem>> -> memref<1x128xf32, #tpu.memory_space<vmem>>
    %97 = tpu.memref_slice %arg11[%c0_i32_57, %c7_i32] : memref<2x14x!tpu.dma_semaphore, #tpu.memory_space<semaphore_mem>> -> memref<1x1x!tpu.dma_semaphore, #tpu.memory_space<semaphore_mem>>
    %98 = tpu.memref_squeeze %97 : memref<1x1x!tpu.dma_semaphore, #tpu.memory_space<semaphore_mem>> -> memref<!tpu.dma_semaphore, #tpu.memory_space<semaphore_mem>>
    tpu.enqueue_dma source(%94 : memref<1x128xf32, #tpu.memory_space<any>>) target(%96 : memref<1x128xf32, #tpu.memory_space<vmem>>) target_semaphore(%98 : memref<!tpu.dma_semaphore, #tpu.memory_space<semaphore_mem>>)
    %c0_i32_61 = arith.constant 0 : i32
    %c0_i32_62 = arith.constant 0 : i32
    %c8_i32 = arith.constant 8 : i32
    %c0_i32_63 = arith.constant 0 : i32
    %99 = tpu.memref_slice %arg6[%19, %c0_i32_63] : memref<64x128xf32, #tpu.memory_space<any>> -> memref<1x128xf32, #tpu.memory_space<any>>
    %c2_i32_64 = arith.constant 2 : i32
    %c0_i32_65 = arith.constant 0 : i32
    %100 = tpu.memref_slice %arg10[%c0_i32_61, %c2_i32_64, %c0_i32_65] : memref<2x8x128xf32, #tpu.memory_space<vmem>> -> memref<1x1x128xf32, #tpu.memory_space<vmem>>
    %101 = tpu.memref_squeeze %100 : memref<1x1x128xf32, #tpu.memory_space<vmem>> -> memref<1x128xf32, #tpu.memory_space<vmem>>
    %102 = tpu.memref_slice %arg11[%c0_i32_62, %c8_i32] : memref<2x14x!tpu.dma_semaphore, #tpu.memory_space<semaphore_mem>> -> memref<1x1x!tpu.dma_semaphore, #tpu.memory_space<semaphore_mem>>
    %103 = tpu.memref_squeeze %102 : memref<1x1x!tpu.dma_semaphore, #tpu.memory_space<semaphore_mem>> -> memref<!tpu.dma_semaphore, #tpu.memory_space<semaphore_mem>>
    tpu.enqueue_dma source(%99 : memref<1x128xf32, #tpu.memory_space<any>>) target(%101 : memref<1x128xf32, #tpu.memory_space<vmem>>) target_semaphore(%103 : memref<!tpu.dma_semaphore, #tpu.memory_space<semaphore_mem>>)
    %c0_i32_66 = arith.constant 0 : i32
    %c0_i32_67 = arith.constant 0 : i32
    %c9_i32 = arith.constant 9 : i32
    %c0_i32_68 = arith.constant 0 : i32
    %104 = tpu.memref_slice %arg6[%21, %c0_i32_68] : memref<64x128xf32, #tpu.memory_space<any>> -> memref<1x128xf32, #tpu.memory_space<any>>
    %c3_i32_69 = arith.constant 3 : i32
    %c0_i32_70 = arith.constant 0 : i32
    %105 = tpu.memref_slice %arg10[%c0_i32_66, %c3_i32_69, %c0_i32_70] : memref<2x8x128xf32, #tpu.memory_space<vmem>> -> memref<1x1x128xf32, #tpu.memory_space<vmem>>
    %106 = tpu.memref_squeeze %105 : memref<1x1x128xf32, #tpu.memory_space<vmem>> -> memref<1x128xf32, #tpu.memory_space<vmem>>
    %107 = tpu.memref_slice %arg11[%c0_i32_67, %c9_i32] : memref<2x14x!tpu.dma_semaphore, #tpu.memory_space<semaphore_mem>> -> memref<1x1x!tpu.dma_semaphore, #tpu.memory_space<semaphore_mem>>
    %108 = tpu.memref_squeeze %107 : memref<1x1x!tpu.dma_semaphore, #tpu.memory_space<semaphore_mem>> -> memref<!tpu.dma_semaphore, #tpu.memory_space<semaphore_mem>>
    tpu.enqueue_dma source(%104 : memref<1x128xf32, #tpu.memory_space<any>>) target(%106 : memref<1x128xf32, #tpu.memory_space<vmem>>) target_semaphore(%108 : memref<!tpu.dma_semaphore, #tpu.memory_space<semaphore_mem>>)
    %c0_i32_71 = arith.constant 0 : i32
    %c0_i32_72 = arith.constant 0 : i32
    %c10_i32 = arith.constant 10 : i32
    %c0_i32_73 = arith.constant 0 : i32
    %109 = tpu.memref_slice %arg6[%23, %c0_i32_73] : memref<64x128xf32, #tpu.memory_space<any>> -> memref<1x128xf32, #tpu.memory_space<any>>
    %c4_i32_74 = arith.constant 4 : i32
    %c0_i32_75 = arith.constant 0 : i32
    %110 = tpu.memref_slice %arg10[%c0_i32_71, %c4_i32_74, %c0_i32_75] : memref<2x8x128xf32, #tpu.memory_space<vmem>> -> memref<1x1x128xf32, #tpu.memory_space<vmem>>
    %111 = tpu.memref_squeeze %110 : memref<1x1x128xf32, #tpu.memory_space<vmem>> -> memref<1x128xf32, #tpu.memory_space<vmem>>
    %112 = tpu.memref_slice %arg11[%c0_i32_72, %c10_i32] : memref<2x14x!tpu.dma_semaphore, #tpu.memory_space<semaphore_mem>> -> memref<1x1x!tpu.dma_semaphore, #tpu.memory_space<semaphore_mem>>
    %113 = tpu.memref_squeeze %112 : memref<1x1x!tpu.dma_semaphore, #tpu.memory_space<semaphore_mem>> -> memref<!tpu.dma_semaphore, #tpu.memory_space<semaphore_mem>>
    tpu.enqueue_dma source(%109 : memref<1x128xf32, #tpu.memory_space<any>>) target(%111 : memref<1x128xf32, #tpu.memory_space<vmem>>) target_semaphore(%113 : memref<!tpu.dma_semaphore, #tpu.memory_space<semaphore_mem>>)
    %c0_i32_76 = arith.constant 0 : i32
    %c0_i32_77 = arith.constant 0 : i32
    %c11_i32 = arith.constant 11 : i32
    %c0_i32_78 = arith.constant 0 : i32
    %114 = tpu.memref_slice %arg6[%25, %c0_i32_78] : memref<64x128xf32, #tpu.memory_space<any>> -> memref<1x128xf32, #tpu.memory_space<any>>
    %c5_i32_79 = arith.constant 5 : i32
    %c0_i32_80 = arith.constant 0 : i32
    %115 = tpu.memref_slice %arg10[%c0_i32_76, %c5_i32_79, %c0_i32_80] : memref<2x8x128xf32, #tpu.memory_space<vmem>> -> memref<1x1x128xf32, #tpu.memory_space<vmem>>
    %116 = tpu.memref_squeeze %115 : memref<1x1x128xf32, #tpu.memory_space<vmem>> -> memref<1x128xf32, #tpu.memory_space<vmem>>
    %117 = tpu.memref_slice %arg11[%c0_i32_77, %c11_i32] : memref<2x14x!tpu.dma_semaphore, #tpu.memory_space<semaphore_mem>> -> memref<1x1x!tpu.dma_semaphore, #tpu.memory_space<semaphore_mem>>
    %118 = tpu.memref_squeeze %117 : memref<1x1x!tpu.dma_semaphore, #tpu.memory_space<semaphore_mem>> -> memref<!tpu.dma_semaphore, #tpu.memory_space<semaphore_mem>>
    tpu.enqueue_dma source(%114 : memref<1x128xf32, #tpu.memory_space<any>>) target(%116 : memref<1x128xf32, #tpu.memory_space<vmem>>) target_semaphore(%118 : memref<!tpu.dma_semaphore, #tpu.memory_space<semaphore_mem>>)
    %c0_i32_81 = arith.constant 0 : i32
    %c0_i32_82 = arith.constant 0 : i32
    %c12_i32 = arith.constant 12 : i32
    %c0_i32_83 = arith.constant 0 : i32
    %119 = tpu.memref_slice %arg6[%27, %c0_i32_83] : memref<64x128xf32, #tpu.memory_space<any>> -> memref<1x128xf32, #tpu.memory_space<any>>
    %c6_i32_84 = arith.constant 6 : i32
    %c0_i32_85 = arith.constant 0 : i32
    %120 = tpu.memref_slice %arg10[%c0_i32_81, %c6_i32_84, %c0_i32_85] : memref<2x8x128xf32, #tpu.memory_space<vmem>> -> memref<1x1x128xf32, #tpu.memory_space<vmem>>
    %121 = tpu.memref_squeeze %120 : memref<1x1x128xf32, #tpu.memory_space<vmem>> -> memref<1x128xf32, #tpu.memory_space<vmem>>
    %122 = tpu.memref_slice %arg11[%c0_i32_82, %c12_i32] : memref<2x14x!tpu.dma_semaphore, #tpu.memory_space<semaphore_mem>> -> memref<1x1x!tpu.dma_semaphore, #tpu.memory_space<semaphore_mem>>
    %123 = tpu.memref_squeeze %122 : memref<1x1x!tpu.dma_semaphore, #tpu.memory_space<semaphore_mem>> -> memref<!tpu.dma_semaphore, #tpu.memory_space<semaphore_mem>>
    tpu.enqueue_dma source(%119 : memref<1x128xf32, #tpu.memory_space<any>>) target(%121 : memref<1x128xf32, #tpu.memory_space<vmem>>) target_semaphore(%123 : memref<!tpu.dma_semaphore, #tpu.memory_space<semaphore_mem>>)
    %c0_i32_86 = arith.constant 0 : i32
    %c0_i32_87 = arith.constant 0 : i32
    %c13_i32 = arith.constant 13 : i32
    %c0_i32_88 = arith.constant 0 : i32
    %124 = tpu.memref_slice %arg6[%29, %c0_i32_88] : memref<64x128xf32, #tpu.memory_space<any>> -> memref<1x128xf32, #tpu.memory_space<any>>
    %c7_i32_89 = arith.constant 7 : i32
    %c0_i32_90 = arith.constant 0 : i32
    %125 = tpu.memref_slice %arg10[%c0_i32_86, %c7_i32_89, %c0_i32_90] : memref<2x8x128xf32, #tpu.memory_space<vmem>> -> memref<1x1x128xf32, #tpu.memory_space<vmem>>
    %126 = tpu.memref_squeeze %125 : memref<1x1x128xf32, #tpu.memory_space<vmem>> -> memref<1x128xf32, #tpu.memory_space<vmem>>
    %127 = tpu.memref_slice %arg11[%c0_i32_87, %c13_i32] : memref<2x14x!tpu.dma_semaphore, #tpu.memory_space<semaphore_mem>> -> memref<1x1x!tpu.dma_semaphore, #tpu.memory_space<semaphore_mem>>
    %128 = tpu.memref_squeeze %127 : memref<1x1x!tpu.dma_semaphore, #tpu.memory_space<semaphore_mem>> -> memref<!tpu.dma_semaphore, #tpu.memory_space<semaphore_mem>>
    tpu.enqueue_dma source(%124 : memref<1x128xf32, #tpu.memory_space<any>>) target(%126 : memref<1x128xf32, #tpu.memory_space<vmem>>) target_semaphore(%128 : memref<!tpu.dma_semaphore, #tpu.memory_space<semaphore_mem>>)
    %c1_i32_91 = arith.constant 1 : i32
    %c0_i32_92 = arith.constant 0 : i32
    %c0_i32_93 = arith.constant 0 : i32
    %129 = tpu.memref_slice %arg4[%33, %c0_i32_93] : memref<16x128xf32, #tpu.memory_space<any>> -> memref<1x128xf32, #tpu.memory_space<any>>
    %c1_i32_94 = arith.constant 1 : i32
    %c0_i32_95 = arith.constant 0 : i32
    %130 = tpu.memref_slice %arg8[%c1_i32_94, %c0_i32_95] : memref<2x128xf32, #tpu.memory_space<vmem>> -> memref<1x128xf32, #tpu.memory_space<vmem>>
    %131 = tpu.memref_slice %arg11[%c1_i32_91, %c0_i32_92] : memref<2x14x!tpu.dma_semaphore, #tpu.memory_space<semaphore_mem>> -> memref<1x1x!tpu.dma_semaphore, #tpu.memory_space<semaphore_mem>>
    %132 = tpu.memref_squeeze %131 : memref<1x1x!tpu.dma_semaphore, #tpu.memory_space<semaphore_mem>> -> memref<!tpu.dma_semaphore, #tpu.memory_space<semaphore_mem>>
    tpu.enqueue_dma source(%129 : memref<1x128xf32, #tpu.memory_space<any>>) target(%130 : memref<1x128xf32, #tpu.memory_space<vmem>>) target_semaphore(%132 : memref<!tpu.dma_semaphore, #tpu.memory_space<semaphore_mem>>)
    %c1_i32_96 = arith.constant 1 : i32
    %c1_i32_97 = arith.constant 1 : i32
    %c1_i32_98 = arith.constant 1 : i32
    %c0_i32_99 = arith.constant 0 : i32
    %133 = tpu.memref_slice %arg5[%35, %c0_i32_99] : memref<64x128xf32, #tpu.memory_space<any>> -> memref<1x128xf32, #tpu.memory_space<any>>
    %c0_i32_100 = arith.constant 0 : i32
    %c0_i32_101 = arith.constant 0 : i32
    %134 = tpu.memref_slice %arg9[%c1_i32_96, %c0_i32_100, %c0_i32_101] : memref<2x5x128xf32, #tpu.memory_space<vmem>> -> memref<1x1x128xf32, #tpu.memory_space<vmem>>
    %135 = tpu.memref_squeeze %134 : memref<1x1x128xf32, #tpu.memory_space<vmem>> -> memref<1x128xf32, #tpu.memory_space<vmem>>
    %136 = tpu.memref_slice %arg11[%c1_i32_97, %c1_i32_98] : memref<2x14x!tpu.dma_semaphore, #tpu.memory_space<semaphore_mem>> -> memref<1x1x!tpu.dma_semaphore, #tpu.memory_space<semaphore_mem>>
    %137 = tpu.memref_squeeze %136 : memref<1x1x!tpu.dma_semaphore, #tpu.memory_space<semaphore_mem>> -> memref<!tpu.dma_semaphore, #tpu.memory_space<semaphore_mem>>
    tpu.enqueue_dma source(%133 : memref<1x128xf32, #tpu.memory_space<any>>) target(%135 : memref<1x128xf32, #tpu.memory_space<vmem>>) target_semaphore(%137 : memref<!tpu.dma_semaphore, #tpu.memory_space<semaphore_mem>>)
    %c1_i32_102 = arith.constant 1 : i32
    %c1_i32_103 = arith.constant 1 : i32
    %c2_i32_104 = arith.constant 2 : i32
    %c0_i32_105 = arith.constant 0 : i32
    %138 = tpu.memref_slice %arg5[%37, %c0_i32_105] : memref<64x128xf32, #tpu.memory_space<any>> -> memref<1x128xf32, #tpu.memory_space<any>>
    %c1_i32_106 = arith.constant 1 : i32
    %c0_i32_107 = arith.constant 0 : i32
    %139 = tpu.memref_slice %arg9[%c1_i32_102, %c1_i32_106, %c0_i32_107] : memref<2x5x128xf32, #tpu.memory_space<vmem>> -> memref<1x1x128xf32, #tpu.memory_space<vmem>>
    %140 = tpu.memref_squeeze %139 : memref<1x1x128xf32, #tpu.memory_space<vmem>> -> memref<1x128xf32, #tpu.memory_space<vmem>>
    %141 = tpu.memref_slice %arg11[%c1_i32_103, %c2_i32_104] : memref<2x14x!tpu.dma_semaphore, #tpu.memory_space<semaphore_mem>> -> memref<1x1x!tpu.dma_semaphore, #tpu.memory_space<semaphore_mem>>
    %142 = tpu.memref_squeeze %141 : memref<1x1x!tpu.dma_semaphore, #tpu.memory_space<semaphore_mem>> -> memref<!tpu.dma_semaphore, #tpu.memory_space<semaphore_mem>>
    tpu.enqueue_dma source(%138 : memref<1x128xf32, #tpu.memory_space<any>>) target(%140 : memref<1x128xf32, #tpu.memory_space<vmem>>) target_semaphore(%142 : memref<!tpu.dma_semaphore, #tpu.memory_space<semaphore_mem>>)
    %c1_i32_108 = arith.constant 1 : i32
    %c1_i32_109 = arith.constant 1 : i32
    %c3_i32_110 = arith.constant 3 : i32
    %c0_i32_111 = arith.constant 0 : i32
    %143 = tpu.memref_slice %arg5[%39, %c0_i32_111] : memref<64x128xf32, #tpu.memory_space<any>> -> memref<1x128xf32, #tpu.memory_space<any>>
    %c2_i32_112 = arith.constant 2 : i32
    %c0_i32_113 = arith.constant 0 : i32
    %144 = tpu.memref_slice %arg9[%c1_i32_108, %c2_i32_112, %c0_i32_113] : memref<2x5x128xf32, #tpu.memory_space<vmem>> -> memref<1x1x128xf32, #tpu.memory_space<vmem>>
    %145 = tpu.memref_squeeze %144 : memref<1x1x128xf32, #tpu.memory_space<vmem>> -> memref<1x128xf32, #tpu.memory_space<vmem>>
    %146 = tpu.memref_slice %arg11[%c1_i32_109, %c3_i32_110] : memref<2x14x!tpu.dma_semaphore, #tpu.memory_space<semaphore_mem>> -> memref<1x1x!tpu.dma_semaphore, #tpu.memory_space<semaphore_mem>>
    %147 = tpu.memref_squeeze %146 : memref<1x1x!tpu.dma_semaphore, #tpu.memory_space<semaphore_mem>> -> memref<!tpu.dma_semaphore, #tpu.memory_space<semaphore_mem>>
    tpu.enqueue_dma source(%143 : memref<1x128xf32, #tpu.memory_space<any>>) target(%145 : memref<1x128xf32, #tpu.memory_space<vmem>>) target_semaphore(%147 : memref<!tpu.dma_semaphore, #tpu.memory_space<semaphore_mem>>)
    %c1_i32_114 = arith.constant 1 : i32
    %c1_i32_115 = arith.constant 1 : i32
    %c4_i32_116 = arith.constant 4 : i32
    %c0_i32_117 = arith.constant 0 : i32
    %148 = tpu.memref_slice %arg5[%41, %c0_i32_117] : memref<64x128xf32, #tpu.memory_space<any>> -> memref<1x128xf32, #tpu.memory_space<any>>
    %c3_i32_118 = arith.constant 3 : i32
    %c0_i32_119 = arith.constant 0 : i32
    %149 = tpu.memref_slice %arg9[%c1_i32_114, %c3_i32_118, %c0_i32_119] : memref<2x5x128xf32, #tpu.memory_space<vmem>> -> memref<1x1x128xf32, #tpu.memory_space<vmem>>
    %150 = tpu.memref_squeeze %149 : memref<1x1x128xf32, #tpu.memory_space<vmem>> -> memref<1x128xf32, #tpu.memory_space<vmem>>
    %151 = tpu.memref_slice %arg11[%c1_i32_115, %c4_i32_116] : memref<2x14x!tpu.dma_semaphore, #tpu.memory_space<semaphore_mem>> -> memref<1x1x!tpu.dma_semaphore, #tpu.memory_space<semaphore_mem>>
    %152 = tpu.memref_squeeze %151 : memref<1x1x!tpu.dma_semaphore, #tpu.memory_space<semaphore_mem>> -> memref<!tpu.dma_semaphore, #tpu.memory_space<semaphore_mem>>
    tpu.enqueue_dma source(%148 : memref<1x128xf32, #tpu.memory_space<any>>) target(%150 : memref<1x128xf32, #tpu.memory_space<vmem>>) target_semaphore(%152 : memref<!tpu.dma_semaphore, #tpu.memory_space<semaphore_mem>>)
    %c1_i32_120 = arith.constant 1 : i32
    %c1_i32_121 = arith.constant 1 : i32
    %c5_i32_122 = arith.constant 5 : i32
    %c0_i32_123 = arith.constant 0 : i32
    %153 = tpu.memref_slice %arg5[%43, %c0_i32_123] : memref<64x128xf32, #tpu.memory_space<any>> -> memref<1x128xf32, #tpu.memory_space<any>>
    %c4_i32_124 = arith.constant 4 : i32
    %c0_i32_125 = arith.constant 0 : i32
    %154 = tpu.memref_slice %arg9[%c1_i32_120, %c4_i32_124, %c0_i32_125] : memref<2x5x128xf32, #tpu.memory_space<vmem>> -> memref<1x1x128xf32, #tpu.memory_space<vmem>>
    %155 = tpu.memref_squeeze %154 : memref<1x1x128xf32, #tpu.memory_space<vmem>> -> memref<1x128xf32, #tpu.memory_space<vmem>>
    %156 = tpu.memref_slice %arg11[%c1_i32_121, %c5_i32_122] : memref<2x14x!tpu.dma_semaphore, #tpu.memory_space<semaphore_mem>> -> memref<1x1x!tpu.dma_semaphore, #tpu.memory_space<semaphore_mem>>
    %157 = tpu.memref_squeeze %156 : memref<1x1x!tpu.dma_semaphore, #tpu.memory_space<semaphore_mem>> -> memref<!tpu.dma_semaphore, #tpu.memory_space<semaphore_mem>>
    tpu.enqueue_dma source(%153 : memref<1x128xf32, #tpu.memory_space<any>>) target(%155 : memref<1x128xf32, #tpu.memory_space<vmem>>) target_semaphore(%157 : memref<!tpu.dma_semaphore, #tpu.memory_space<semaphore_mem>>)
    %c1_i32_126 = arith.constant 1 : i32
    %c1_i32_127 = arith.constant 1 : i32
    %c6_i32_128 = arith.constant 6 : i32
    %c0_i32_129 = arith.constant 0 : i32
    %158 = tpu.memref_slice %arg6[%45, %c0_i32_129] : memref<64x128xf32, #tpu.memory_space<any>> -> memref<1x128xf32, #tpu.memory_space<any>>
    %c0_i32_130 = arith.constant 0 : i32
    %c0_i32_131 = arith.constant 0 : i32
    %159 = tpu.memref_slice %arg10[%c1_i32_126, %c0_i32_130, %c0_i32_131] : memref<2x8x128xf32, #tpu.memory_space<vmem>> -> memref<1x1x128xf32, #tpu.memory_space<vmem>>
    %160 = tpu.memref_squeeze %159 : memref<1x1x128xf32, #tpu.memory_space<vmem>> -> memref<1x128xf32, #tpu.memory_space<vmem>>
    %161 = tpu.memref_slice %arg11[%c1_i32_127, %c6_i32_128] : memref<2x14x!tpu.dma_semaphore, #tpu.memory_space<semaphore_mem>> -> memref<1x1x!tpu.dma_semaphore, #tpu.memory_space<semaphore_mem>>
    %162 = tpu.memref_squeeze %161 : memref<1x1x!tpu.dma_semaphore, #tpu.memory_space<semaphore_mem>> -> memref<!tpu.dma_semaphore, #tpu.memory_space<semaphore_mem>>
    tpu.enqueue_dma source(%158 : memref<1x128xf32, #tpu.memory_space<any>>) target(%160 : memref<1x128xf32, #tpu.memory_space<vmem>>) target_semaphore(%162 : memref<!tpu.dma_semaphore, #tpu.memory_space<semaphore_mem>>)
    %c1_i32_132 = arith.constant 1 : i32
    %c1_i32_133 = arith.constant 1 : i32
    %c7_i32_134 = arith.constant 7 : i32
    %c0_i32_135 = arith.constant 0 : i32
    %163 = tpu.memref_slice %arg6[%47, %c0_i32_135] : memref<64x128xf32, #tpu.memory_space<any>> -> memref<1x128xf32, #tpu.memory_space<any>>
    %c1_i32_136 = arith.constant 1 : i32
    %c0_i32_137 = arith.constant 0 : i32
    %164 = tpu.memref_slice %arg10[%c1_i32_132, %c1_i32_136, %c0_i32_137] : memref<2x8x128xf32, #tpu.memory_space<vmem>> -> memref<1x1x128xf32, #tpu.memory_space<vmem>>
    %165 = tpu.memref_squeeze %164 : memref<1x1x128xf32, #tpu.memory_space<vmem>> -> memref<1x128xf32, #tpu.memory_space<vmem>>
    %166 = tpu.memref_slice %arg11[%c1_i32_133, %c7_i32_134] : memref<2x14x!tpu.dma_semaphore, #tpu.memory_space<semaphore_mem>> -> memref<1x1x!tpu.dma_semaphore, #tpu.memory_space<semaphore_mem>>
    %167 = tpu.memref_squeeze %166 : memref<1x1x!tpu.dma_semaphore, #tpu.memory_space<semaphore_mem>> -> memref<!tpu.dma_semaphore, #tpu.memory_space<semaphore_mem>>
    tpu.enqueue_dma source(%163 : memref<1x128xf32, #tpu.memory_space<any>>) target(%165 : memref<1x128xf32, #tpu.memory_space<vmem>>) target_semaphore(%167 : memref<!tpu.dma_semaphore, #tpu.memory_space<semaphore_mem>>)
    %c1_i32_138 = arith.constant 1 : i32
    %c1_i32_139 = arith.constant 1 : i32
    %c8_i32_140 = arith.constant 8 : i32
    %c0_i32_141 = arith.constant 0 : i32
    %168 = tpu.memref_slice %arg6[%49, %c0_i32_141] : memref<64x128xf32, #tpu.memory_space<any>> -> memref<1x128xf32, #tpu.memory_space<any>>
    %c2_i32_142 = arith.constant 2 : i32
    %c0_i32_143 = arith.constant 0 : i32
    %169 = tpu.memref_slice %arg10[%c1_i32_138, %c2_i32_142, %c0_i32_143] : memref<2x8x128xf32, #tpu.memory_space<vmem>> -> memref<1x1x128xf32, #tpu.memory_space<vmem>>
    %170 = tpu.memref_squeeze %169 : memref<1x1x128xf32, #tpu.memory_space<vmem>> -> memref<1x128xf32, #tpu.memory_space<vmem>>
    %171 = tpu.memref_slice %arg11[%c1_i32_139, %c8_i32_140] : memref<2x14x!tpu.dma_semaphore, #tpu.memory_space<semaphore_mem>> -> memref<1x1x!tpu.dma_semaphore, #tpu.memory_space<semaphore_mem>>
    %172 = tpu.memref_squeeze %171 : memref<1x1x!tpu.dma_semaphore, #tpu.memory_space<semaphore_mem>> -> memref<!tpu.dma_semaphore, #tpu.memory_space<semaphore_mem>>
    tpu.enqueue_dma source(%168 : memref<1x128xf32, #tpu.memory_space<any>>) target(%170 : memref<1x128xf32, #tpu.memory_space<vmem>>) target_semaphore(%172 : memref<!tpu.dma_semaphore, #tpu.memory_space<semaphore_mem>>)
    %c1_i32_144 = arith.constant 1 : i32
    %c1_i32_145 = arith.constant 1 : i32
    %c9_i32_146 = arith.constant 9 : i32
    %c0_i32_147 = arith.constant 0 : i32
    %173 = tpu.memref_slice %arg6[%51, %c0_i32_147] : memref<64x128xf32, #tpu.memory_space<any>> -> memref<1x128xf32, #tpu.memory_space<any>>
    %c3_i32_148 = arith.constant 3 : i32
    %c0_i32_149 = arith.constant 0 : i32
    %174 = tpu.memref_slice %arg10[%c1_i32_144, %c3_i32_148, %c0_i32_149] : memref<2x8x128xf32, #tpu.memory_space<vmem>> -> memref<1x1x128xf32, #tpu.memory_space<vmem>>
    %175 = tpu.memref_squeeze %174 : memref<1x1x128xf32, #tpu.memory_space<vmem>> -> memref<1x128xf32, #tpu.memory_space<vmem>>
    %176 = tpu.memref_slice %arg11[%c1_i32_145, %c9_i32_146] : memref<2x14x!tpu.dma_semaphore, #tpu.memory_space<semaphore_mem>> -> memref<1x1x!tpu.dma_semaphore, #tpu.memory_space<semaphore_mem>>
    %177 = tpu.memref_squeeze %176 : memref<1x1x!tpu.dma_semaphore, #tpu.memory_space<semaphore_mem>> -> memref<!tpu.dma_semaphore, #tpu.memory_space<semaphore_mem>>
    tpu.enqueue_dma source(%173 : memref<1x128xf32, #tpu.memory_space<any>>) target(%175 : memref<1x128xf32, #tpu.memory_space<vmem>>) target_semaphore(%177 : memref<!tpu.dma_semaphore, #tpu.memory_space<semaphore_mem>>)
    %c1_i32_150 = arith.constant 1 : i32
    %c1_i32_151 = arith.constant 1 : i32
    %c10_i32_152 = arith.constant 10 : i32
    %c0_i32_153 = arith.constant 0 : i32
    %178 = tpu.memref_slice %arg6[%53, %c0_i32_153] : memref<64x128xf32, #tpu.memory_space<any>> -> memref<1x128xf32, #tpu.memory_space<any>>
    %c4_i32_154 = arith.constant 4 : i32
    %c0_i32_155 = arith.constant 0 : i32
    %179 = tpu.memref_slice %arg10[%c1_i32_150, %c4_i32_154, %c0_i32_155] : memref<2x8x128xf32, #tpu.memory_space<vmem>> -> memref<1x1x128xf32, #tpu.memory_space<vmem>>
    %180 = tpu.memref_squeeze %179 : memref<1x1x128xf32, #tpu.memory_space<vmem>> -> memref<1x128xf32, #tpu.memory_space<vmem>>
    %181 = tpu.memref_slice %arg11[%c1_i32_151, %c10_i32_152] : memref<2x14x!tpu.dma_semaphore, #tpu.memory_space<semaphore_mem>> -> memref<1x1x!tpu.dma_semaphore, #tpu.memory_space<semaphore_mem>>
    %182 = tpu.memref_squeeze %181 : memref<1x1x!tpu.dma_semaphore, #tpu.memory_space<semaphore_mem>> -> memref<!tpu.dma_semaphore, #tpu.memory_space<semaphore_mem>>
    tpu.enqueue_dma source(%178 : memref<1x128xf32, #tpu.memory_space<any>>) target(%180 : memref<1x128xf32, #tpu.memory_space<vmem>>) target_semaphore(%182 : memref<!tpu.dma_semaphore, #tpu.memory_space<semaphore_mem>>)
    %c1_i32_156 = arith.constant 1 : i32
    %c1_i32_157 = arith.constant 1 : i32
    %c11_i32_158 = arith.constant 11 : i32
    %c0_i32_159 = arith.constant 0 : i32
    %183 = tpu.memref_slice %arg6[%55, %c0_i32_159] : memref<64x128xf32, #tpu.memory_space<any>> -> memref<1x128xf32, #tpu.memory_space<any>>
    %c5_i32_160 = arith.constant 5 : i32
    %c0_i32_161 = arith.constant 0 : i32
    %184 = tpu.memref_slice %arg10[%c1_i32_156, %c5_i32_160, %c0_i32_161] : memref<2x8x128xf32, #tpu.memory_space<vmem>> -> memref<1x1x128xf32, #tpu.memory_space<vmem>>
    %185 = tpu.memref_squeeze %184 : memref<1x1x128xf32, #tpu.memory_space<vmem>> -> memref<1x128xf32, #tpu.memory_space<vmem>>
    %186 = tpu.memref_slice %arg11[%c1_i32_157, %c11_i32_158] : memref<2x14x!tpu.dma_semaphore, #tpu.memory_space<semaphore_mem>> -> memref<1x1x!tpu.dma_semaphore, #tpu.memory_space<semaphore_mem>>
    %187 = tpu.memref_squeeze %186 : memref<1x1x!tpu.dma_semaphore, #tpu.memory_space<semaphore_mem>> -> memref<!tpu.dma_semaphore, #tpu.memory_space<semaphore_mem>>
    tpu.enqueue_dma source(%183 : memref<1x128xf32, #tpu.memory_space<any>>) target(%185 : memref<1x128xf32, #tpu.memory_space<vmem>>) target_semaphore(%187 : memref<!tpu.dma_semaphore, #tpu.memory_space<semaphore_mem>>)
    %c1_i32_162 = arith.constant 1 : i32
    %c1_i32_163 = arith.constant 1 : i32
    %c12_i32_164 = arith.constant 12 : i32
    %c0_i32_165 = arith.constant 0 : i32
    %188 = tpu.memref_slice %arg6[%57, %c0_i32_165] : memref<64x128xf32, #tpu.memory_space<any>> -> memref<1x128xf32, #tpu.memory_space<any>>
    %c6_i32_166 = arith.constant 6 : i32
    %c0_i32_167 = arith.constant 0 : i32
    %189 = tpu.memref_slice %arg10[%c1_i32_162, %c6_i32_166, %c0_i32_167] : memref<2x8x128xf32, #tpu.memory_space<vmem>> -> memref<1x1x128xf32, #tpu.memory_space<vmem>>
    %190 = tpu.memref_squeeze %189 : memref<1x1x128xf32, #tpu.memory_space<vmem>> -> memref<1x128xf32, #tpu.memory_space<vmem>>
    %191 = tpu.memref_slice %arg11[%c1_i32_163, %c12_i32_164] : memref<2x14x!tpu.dma_semaphore, #tpu.memory_space<semaphore_mem>> -> memref<1x1x!tpu.dma_semaphore, #tpu.memory_space<semaphore_mem>>
    %192 = tpu.memref_squeeze %191 : memref<1x1x!tpu.dma_semaphore, #tpu.memory_space<semaphore_mem>> -> memref<!tpu.dma_semaphore, #tpu.memory_space<semaphore_mem>>
    tpu.enqueue_dma source(%188 : memref<1x128xf32, #tpu.memory_space<any>>) target(%190 : memref<1x128xf32, #tpu.memory_space<vmem>>) target_semaphore(%192 : memref<!tpu.dma_semaphore, #tpu.memory_space<semaphore_mem>>)
    %c1_i32_168 = arith.constant 1 : i32
    %c1_i32_169 = arith.constant 1 : i32
    %c13_i32_170 = arith.constant 13 : i32
    %c0_i32_171 = arith.constant 0 : i32
    %193 = tpu.memref_slice %arg6[%59, %c0_i32_171] : memref<64x128xf32, #tpu.memory_space<any>> -> memref<1x128xf32, #tpu.memory_space<any>>
    %c7_i32_172 = arith.constant 7 : i32
    %c0_i32_173 = arith.constant 0 : i32
    %194 = tpu.memref_slice %arg10[%c1_i32_168, %c7_i32_172, %c0_i32_173] : memref<2x8x128xf32, #tpu.memory_space<vmem>> -> memref<1x1x128xf32, #tpu.memory_space<vmem>>
    %195 = tpu.memref_squeeze %194 : memref<1x1x128xf32, #tpu.memory_space<vmem>> -> memref<1x128xf32, #tpu.memory_space<vmem>>
    %196 = tpu.memref_slice %arg11[%c1_i32_169, %c13_i32_170] : memref<2x14x!tpu.dma_semaphore, #tpu.memory_space<semaphore_mem>> -> memref<1x1x!tpu.dma_semaphore, #tpu.memory_space<semaphore_mem>>
    %197 = tpu.memref_squeeze %196 : memref<1x1x!tpu.dma_semaphore, #tpu.memory_space<semaphore_mem>> -> memref<!tpu.dma_semaphore, #tpu.memory_space<semaphore_mem>>
    tpu.enqueue_dma source(%193 : memref<1x128xf32, #tpu.memory_space<any>>) target(%195 : memref<1x128xf32, #tpu.memory_space<vmem>>) target_semaphore(%197 : memref<!tpu.dma_semaphore, #tpu.memory_space<semaphore_mem>>)
    %c0_i32_174 = arith.constant 0 : i32
    %c0_i32_175 = arith.constant 0 : i32
    %c0_i32_176 = arith.constant 0 : i32
    %198 = tpu.memref_slice %arg4[%3, %c0_i32_176] : memref<16x128xf32, #tpu.memory_space<any>> -> memref<1x128xf32, #tpu.memory_space<any>>
    %c0_i32_177 = arith.constant 0 : i32
    %c0_i32_178 = arith.constant 0 : i32
    %199 = tpu.memref_slice %arg8[%c0_i32_177, %c0_i32_178] : memref<2x128xf32, #tpu.memory_space<vmem>> -> memref<1x128xf32, #tpu.memory_space<vmem>>
    %200 = tpu.memref_slice %arg11[%c0_i32_174, %c0_i32_175] : memref<2x14x!tpu.dma_semaphore, #tpu.memory_space<semaphore_mem>> -> memref<1x1x!tpu.dma_semaphore, #tpu.memory_space<semaphore_mem>>
    %201 = tpu.memref_squeeze %200 : memref<1x1x!tpu.dma_semaphore, #tpu.memory_space<semaphore_mem>> -> memref<!tpu.dma_semaphore, #tpu.memory_space<semaphore_mem>>
    tpu.wait_dma2 semaphore(%201 : memref<!tpu.dma_semaphore, #tpu.memory_space<semaphore_mem>>) src(%198 : memref<1x128xf32, #tpu.memory_space<any>>) dst(%199 : memref<1x128xf32, #tpu.memory_space<vmem>>)
    %c0_i32_179 = arith.constant 0 : i32
    %c0_i32_180 = arith.constant 0 : i32
    %c1_i32_181 = arith.constant 1 : i32
    %c0_i32_182 = arith.constant 0 : i32
    %202 = tpu.memref_slice %arg5[%5, %c0_i32_182] : memref<64x128xf32, #tpu.memory_space<any>> -> memref<1x128xf32, #tpu.memory_space<any>>
    %c0_i32_183 = arith.constant 0 : i32
    %c0_i32_184 = arith.constant 0 : i32
    %203 = tpu.memref_slice %arg9[%c0_i32_179, %c0_i32_183, %c0_i32_184] : memref<2x5x128xf32, #tpu.memory_space<vmem>> -> memref<1x1x128xf32, #tpu.memory_space<vmem>>
    %204 = tpu.memref_squeeze %203 : memref<1x1x128xf32, #tpu.memory_space<vmem>> -> memref<1x128xf32, #tpu.memory_space<vmem>>
    %205 = tpu.memref_slice %arg11[%c0_i32_180, %c1_i32_181] : memref<2x14x!tpu.dma_semaphore, #tpu.memory_space<semaphore_mem>> -> memref<1x1x!tpu.dma_semaphore, #tpu.memory_space<semaphore_mem>>
    %206 = tpu.memref_squeeze %205 : memref<1x1x!tpu.dma_semaphore, #tpu.memory_space<semaphore_mem>> -> memref<!tpu.dma_semaphore, #tpu.memory_space<semaphore_mem>>
    tpu.wait_dma2 semaphore(%206 : memref<!tpu.dma_semaphore, #tpu.memory_space<semaphore_mem>>) src(%202 : memref<1x128xf32, #tpu.memory_space<any>>) dst(%204 : memref<1x128xf32, #tpu.memory_space<vmem>>)
    %c0_i32_185 = arith.constant 0 : i32
    %c0_i32_186 = arith.constant 0 : i32
    %c2_i32_187 = arith.constant 2 : i32
    %c0_i32_188 = arith.constant 0 : i32
    %207 = tpu.memref_slice %arg5[%7, %c0_i32_188] : memref<64x128xf32, #tpu.memory_space<any>> -> memref<1x128xf32, #tpu.memory_space<any>>
    %c1_i32_189 = arith.constant 1 : i32
    %c0_i32_190 = arith.constant 0 : i32
    %208 = tpu.memref_slice %arg9[%c0_i32_185, %c1_i32_189, %c0_i32_190] : memref<2x5x128xf32, #tpu.memory_space<vmem>> -> memref<1x1x128xf32, #tpu.memory_space<vmem>>
    %209 = tpu.memref_squeeze %208 : memref<1x1x128xf32, #tpu.memory_space<vmem>> -> memref<1x128xf32, #tpu.memory_space<vmem>>
    %210 = tpu.memref_slice %arg11[%c0_i32_186, %c2_i32_187] : memref<2x14x!tpu.dma_semaphore, #tpu.memory_space<semaphore_mem>> -> memref<1x1x!tpu.dma_semaphore, #tpu.memory_space<semaphore_mem>>
    %211 = tpu.memref_squeeze %210 : memref<1x1x!tpu.dma_semaphore, #tpu.memory_space<semaphore_mem>> -> memref<!tpu.dma_semaphore, #tpu.memory_space<semaphore_mem>>
    tpu.wait_dma2 semaphore(%211 : memref<!tpu.dma_semaphore, #tpu.memory_space<semaphore_mem>>) src(%207 : memref<1x128xf32, #tpu.memory_space<any>>) dst(%209 : memref<1x128xf32, #tpu.memory_space<vmem>>)
    %c0_i32_191 = arith.constant 0 : i32
    %c0_i32_192 = arith.constant 0 : i32
    %c3_i32_193 = arith.constant 3 : i32
    %c0_i32_194 = arith.constant 0 : i32
    %212 = tpu.memref_slice %arg5[%9, %c0_i32_194] : memref<64x128xf32, #tpu.memory_space<any>> -> memref<1x128xf32, #tpu.memory_space<any>>
    %c2_i32_195 = arith.constant 2 : i32
    %c0_i32_196 = arith.constant 0 : i32
    %213 = tpu.memref_slice %arg9[%c0_i32_191, %c2_i32_195, %c0_i32_196] : memref<2x5x128xf32, #tpu.memory_space<vmem>> -> memref<1x1x128xf32, #tpu.memory_space<vmem>>
    %214 = tpu.memref_squeeze %213 : memref<1x1x128xf32, #tpu.memory_space<vmem>> -> memref<1x128xf32, #tpu.memory_space<vmem>>
    %215 = tpu.memref_slice %arg11[%c0_i32_192, %c3_i32_193] : memref<2x14x!tpu.dma_semaphore, #tpu.memory_space<semaphore_mem>> -> memref<1x1x!tpu.dma_semaphore, #tpu.memory_space<semaphore_mem>>
    %216 = tpu.memref_squeeze %215 : memref<1x1x!tpu.dma_semaphore, #tpu.memory_space<semaphore_mem>> -> memref<!tpu.dma_semaphore, #tpu.memory_space<semaphore_mem>>
    tpu.wait_dma2 semaphore(%216 : memref<!tpu.dma_semaphore, #tpu.memory_space<semaphore_mem>>) src(%212 : memref<1x128xf32, #tpu.memory_space<any>>) dst(%214 : memref<1x128xf32, #tpu.memory_space<vmem>>)
    %c0_i32_197 = arith.constant 0 : i32
    %c0_i32_198 = arith.constant 0 : i32
    %c4_i32_199 = arith.constant 4 : i32
    %c0_i32_200 = arith.constant 0 : i32
    %217 = tpu.memref_slice %arg5[%11, %c0_i32_200] : memref<64x128xf32, #tpu.memory_space<any>> -> memref<1x128xf32, #tpu.memory_space<any>>
    %c3_i32_201 = arith.constant 3 : i32
    %c0_i32_202 = arith.constant 0 : i32
    %218 = tpu.memref_slice %arg9[%c0_i32_197, %c3_i32_201, %c0_i32_202] : memref<2x5x128xf32, #tpu.memory_space<vmem>> -> memref<1x1x128xf32, #tpu.memory_space<vmem>>
    %219 = tpu.memref_squeeze %218 : memref<1x1x128xf32, #tpu.memory_space<vmem>> -> memref<1x128xf32, #tpu.memory_space<vmem>>
    %220 = tpu.memref_slice %arg11[%c0_i32_198, %c4_i32_199] : memref<2x14x!tpu.dma_semaphore, #tpu.memory_space<semaphore_mem>> -> memref<1x1x!tpu.dma_semaphore, #tpu.memory_space<semaphore_mem>>
    %221 = tpu.memref_squeeze %220 : memref<1x1x!tpu.dma_semaphore, #tpu.memory_space<semaphore_mem>> -> memref<!tpu.dma_semaphore, #tpu.memory_space<semaphore_mem>>
    tpu.wait_dma2 semaphore(%221 : memref<!tpu.dma_semaphore, #tpu.memory_space<semaphore_mem>>) src(%217 : memref<1x128xf32, #tpu.memory_space<any>>) dst(%219 : memref<1x128xf32, #tpu.memory_space<vmem>>)
    %c0_i32_203 = arith.constant 0 : i32
    %c0_i32_204 = arith.constant 0 : i32
    %c5_i32_205 = arith.constant 5 : i32
    %c0_i32_206 = arith.constant 0 : i32
    %222 = tpu.memref_slice %arg5[%13, %c0_i32_206] : memref<64x128xf32, #tpu.memory_space<any>> -> memref<1x128xf32, #tpu.memory_space<any>>
    %c4_i32_207 = arith.constant 4 : i32
    %c0_i32_208 = arith.constant 0 : i32
    %223 = tpu.memref_slice %arg9[%c0_i32_203, %c4_i32_207, %c0_i32_208] : memref<2x5x128xf32, #tpu.memory_space<vmem>> -> memref<1x1x128xf32, #tpu.memory_space<vmem>>
    %224 = tpu.memref_squeeze %223 : memref<1x1x128xf32, #tpu.memory_space<vmem>> -> memref<1x128xf32, #tpu.memory_space<vmem>>
    %225 = tpu.memref_slice %arg11[%c0_i32_204, %c5_i32_205] : memref<2x14x!tpu.dma_semaphore, #tpu.memory_space<semaphore_mem>> -> memref<1x1x!tpu.dma_semaphore, #tpu.memory_space<semaphore_mem>>
    %226 = tpu.memref_squeeze %225 : memref<1x1x!tpu.dma_semaphore, #tpu.memory_space<semaphore_mem>> -> memref<!tpu.dma_semaphore, #tpu.memory_space<semaphore_mem>>
    tpu.wait_dma2 semaphore(%226 : memref<!tpu.dma_semaphore, #tpu.memory_space<semaphore_mem>>) src(%222 : memref<1x128xf32, #tpu.memory_space<any>>) dst(%224 : memref<1x128xf32, #tpu.memory_space<vmem>>)
    %c0_i32_209 = arith.constant 0 : i32
    %c0_i32_210 = arith.constant 0 : i32
    %c6_i32_211 = arith.constant 6 : i32
    %c0_i32_212 = arith.constant 0 : i32
    %227 = tpu.memref_slice %arg6[%15, %c0_i32_212] : memref<64x128xf32, #tpu.memory_space<any>> -> memref<1x128xf32, #tpu.memory_space<any>>
    %c0_i32_213 = arith.constant 0 : i32
    %c0_i32_214 = arith.constant 0 : i32
    %228 = tpu.memref_slice %arg10[%c0_i32_209, %c0_i32_213, %c0_i32_214] : memref<2x8x128xf32, #tpu.memory_space<vmem>> -> memref<1x1x128xf32, #tpu.memory_space<vmem>>
    %229 = tpu.memref_squeeze %228 : memref<1x1x128xf32, #tpu.memory_space<vmem>> -> memref<1x128xf32, #tpu.memory_space<vmem>>
    %230 = tpu.memref_slice %arg11[%c0_i32_210, %c6_i32_211] : memref<2x14x!tpu.dma_semaphore, #tpu.memory_space<semaphore_mem>> -> memref<1x1x!tpu.dma_semaphore, #tpu.memory_space<semaphore_mem>>
    %231 = tpu.memref_squeeze %230 : memref<1x1x!tpu.dma_semaphore, #tpu.memory_space<semaphore_mem>> -> memref<!tpu.dma_semaphore, #tpu.memory_space<semaphore_mem>>
    tpu.wait_dma2 semaphore(%231 : memref<!tpu.dma_semaphore, #tpu.memory_space<semaphore_mem>>) src(%227 : memref<1x128xf32, #tpu.memory_space<any>>) dst(%229 : memref<1x128xf32, #tpu.memory_space<vmem>>)
    %c0_i32_215 = arith.constant 0 : i32
    %c0_i32_216 = arith.constant 0 : i32
    %c7_i32_217 = arith.constant 7 : i32
    %c0_i32_218 = arith.constant 0 : i32
    %232 = tpu.memref_slice %arg6[%17, %c0_i32_218] : memref<64x128xf32, #tpu.memory_space<any>> -> memref<1x128xf32, #tpu.memory_space<any>>
    %c1_i32_219 = arith.constant 1 : i32
    %c0_i32_220 = arith.constant 0 : i32
    %233 = tpu.memref_slice %arg10[%c0_i32_215, %c1_i32_219, %c0_i32_220] : memref<2x8x128xf32, #tpu.memory_space<vmem>> -> memref<1x1x128xf32, #tpu.memory_space<vmem>>
    %234 = tpu.memref_squeeze %233 : memref<1x1x128xf32, #tpu.memory_space<vmem>> -> memref<1x128xf32, #tpu.memory_space<vmem>>
    %235 = tpu.memref_slice %arg11[%c0_i32_216, %c7_i32_217] : memref<2x14x!tpu.dma_semaphore, #tpu.memory_space<semaphore_mem>> -> memref<1x1x!tpu.dma_semaphore, #tpu.memory_space<semaphore_mem>>
    %236 = tpu.memref_squeeze %235 : memref<1x1x!tpu.dma_semaphore, #tpu.memory_space<semaphore_mem>> -> memref<!tpu.dma_semaphore, #tpu.memory_space<semaphore_mem>>
    tpu.wait_dma2 semaphore(%236 : memref<!tpu.dma_semaphore, #tpu.memory_space<semaphore_mem>>) src(%232 : memref<1x128xf32, #tpu.memory_space<any>>) dst(%234 : memref<1x128xf32, #tpu.memory_space<vmem>>)
    %c0_i32_221 = arith.constant 0 : i32
    %c0_i32_222 = arith.constant 0 : i32
    %c8_i32_223 = arith.constant 8 : i32
    %c0_i32_224 = arith.constant 0 : i32
    %237 = tpu.memref_slice %arg6[%19, %c0_i32_224] : memref<64x128xf32, #tpu.memory_space<any>> -> memref<1x128xf32, #tpu.memory_space<any>>
    %c2_i32_225 = arith.constant 2 : i32
    %c0_i32_226 = arith.constant 0 : i32
    %238 = tpu.memref_slice %arg10[%c0_i32_221, %c2_i32_225, %c0_i32_226] : memref<2x8x128xf32, #tpu.memory_space<vmem>> -> memref<1x1x128xf32, #tpu.memory_space<vmem>>
    %239 = tpu.memref_squeeze %238 : memref<1x1x128xf32, #tpu.memory_space<vmem>> -> memref<1x128xf32, #tpu.memory_space<vmem>>
    %240 = tpu.memref_slice %arg11[%c0_i32_222, %c8_i32_223] : memref<2x14x!tpu.dma_semaphore, #tpu.memory_space<semaphore_mem>> -> memref<1x1x!tpu.dma_semaphore, #tpu.memory_space<semaphore_mem>>
    %241 = tpu.memref_squeeze %240 : memref<1x1x!tpu.dma_semaphore, #tpu.memory_space<semaphore_mem>> -> memref<!tpu.dma_semaphore, #tpu.memory_space<semaphore_mem>>
    tpu.wait_dma2 semaphore(%241 : memref<!tpu.dma_semaphore, #tpu.memory_space<semaphore_mem>>) src(%237 : memref<1x128xf32, #tpu.memory_space<any>>) dst(%239 : memref<1x128xf32, #tpu.memory_space<vmem>>)
    %c0_i32_227 = arith.constant 0 : i32
    %c0_i32_228 = arith.constant 0 : i32
    %c9_i32_229 = arith.constant 9 : i32
    %c0_i32_230 = arith.constant 0 : i32
    %242 = tpu.memref_slice %arg6[%21, %c0_i32_230] : memref<64x128xf32, #tpu.memory_space<any>> -> memref<1x128xf32, #tpu.memory_space<any>>
    %c3_i32_231 = arith.constant 3 : i32
    %c0_i32_232 = arith.constant 0 : i32
    %243 = tpu.memref_slice %arg10[%c0_i32_227, %c3_i32_231, %c0_i32_232] : memref<2x8x128xf32, #tpu.memory_space<vmem>> -> memref<1x1x128xf32, #tpu.memory_space<vmem>>
    %244 = tpu.memref_squeeze %243 : memref<1x1x128xf32, #tpu.memory_space<vmem>> -> memref<1x128xf32, #tpu.memory_space<vmem>>
    %245 = tpu.memref_slice %arg11[%c0_i32_228, %c9_i32_229] : memref<2x14x!tpu.dma_semaphore, #tpu.memory_space<semaphore_mem>> -> memref<1x1x!tpu.dma_semaphore, #tpu.memory_space<semaphore_mem>>
    %246 = tpu.memref_squeeze %245 : memref<1x1x!tpu.dma_semaphore, #tpu.memory_space<semaphore_mem>> -> memref<!tpu.dma_semaphore, #tpu.memory_space<semaphore_mem>>
    tpu.wait_dma2 semaphore(%246 : memref<!tpu.dma_semaphore, #tpu.memory_space<semaphore_mem>>) src(%242 : memref<1x128xf32, #tpu.memory_space<any>>) dst(%244 : memref<1x128xf32, #tpu.memory_space<vmem>>)
    %c0_i32_233 = arith.constant 0 : i32
    %c0_i32_234 = arith.constant 0 : i32
    %c10_i32_235 = arith.constant 10 : i32
    %c0_i32_236 = arith.constant 0 : i32
    %247 = tpu.memref_slice %arg6[%23, %c0_i32_236] : memref<64x128xf32, #tpu.memory_space<any>> -> memref<1x128xf32, #tpu.memory_space<any>>
    %c4_i32_237 = arith.constant 4 : i32
    %c0_i32_238 = arith.constant 0 : i32
    %248 = tpu.memref_slice %arg10[%c0_i32_233, %c4_i32_237, %c0_i32_238] : memref<2x8x128xf32, #tpu.memory_space<vmem>> -> memref<1x1x128xf32, #tpu.memory_space<vmem>>
    %249 = tpu.memref_squeeze %248 : memref<1x1x128xf32, #tpu.memory_space<vmem>> -> memref<1x128xf32, #tpu.memory_space<vmem>>
    %250 = tpu.memref_slice %arg11[%c0_i32_234, %c10_i32_235] : memref<2x14x!tpu.dma_semaphore, #tpu.memory_space<semaphore_mem>> -> memref<1x1x!tpu.dma_semaphore, #tpu.memory_space<semaphore_mem>>
    %251 = tpu.memref_squeeze %250 : memref<1x1x!tpu.dma_semaphore, #tpu.memory_space<semaphore_mem>> -> memref<!tpu.dma_semaphore, #tpu.memory_space<semaphore_mem>>
    tpu.wait_dma2 semaphore(%251 : memref<!tpu.dma_semaphore, #tpu.memory_space<semaphore_mem>>) src(%247 : memref<1x128xf32, #tpu.memory_space<any>>) dst(%249 : memref<1x128xf32, #tpu.memory_space<vmem>>)
    %c0_i32_239 = arith.constant 0 : i32
    %c0_i32_240 = arith.constant 0 : i32
    %c11_i32_241 = arith.constant 11 : i32
    %c0_i32_242 = arith.constant 0 : i32
    %252 = tpu.memref_slice %arg6[%25, %c0_i32_242] : memref<64x128xf32, #tpu.memory_space<any>> -> memref<1x128xf32, #tpu.memory_space<any>>
    %c5_i32_243 = arith.constant 5 : i32
    %c0_i32_244 = arith.constant 0 : i32
    %253 = tpu.memref_slice %arg10[%c0_i32_239, %c5_i32_243, %c0_i32_244] : memref<2x8x128xf32, #tpu.memory_space<vmem>> -> memref<1x1x128xf32, #tpu.memory_space<vmem>>
    %254 = tpu.memref_squeeze %253 : memref<1x1x128xf32, #tpu.memory_space<vmem>> -> memref<1x128xf32, #tpu.memory_space<vmem>>
    %255 = tpu.memref_slice %arg11[%c0_i32_240, %c11_i32_241] : memref<2x14x!tpu.dma_semaphore, #tpu.memory_space<semaphore_mem>> -> memref<1x1x!tpu.dma_semaphore, #tpu.memory_space<semaphore_mem>>
    %256 = tpu.memref_squeeze %255 : memref<1x1x!tpu.dma_semaphore, #tpu.memory_space<semaphore_mem>> -> memref<!tpu.dma_semaphore, #tpu.memory_space<semaphore_mem>>
    tpu.wait_dma2 semaphore(%256 : memref<!tpu.dma_semaphore, #tpu.memory_space<semaphore_mem>>) src(%252 : memref<1x128xf32, #tpu.memory_space<any>>) dst(%254 : memref<1x128xf32, #tpu.memory_space<vmem>>)
    %c0_i32_245 = arith.constant 0 : i32
    %c0_i32_246 = arith.constant 0 : i32
    %c12_i32_247 = arith.constant 12 : i32
    %c0_i32_248 = arith.constant 0 : i32
    %257 = tpu.memref_slice %arg6[%27, %c0_i32_248] : memref<64x128xf32, #tpu.memory_space<any>> -> memref<1x128xf32, #tpu.memory_space<any>>
    %c6_i32_249 = arith.constant 6 : i32
    %c0_i32_250 = arith.constant 0 : i32
    %258 = tpu.memref_slice %arg10[%c0_i32_245, %c6_i32_249, %c0_i32_250] : memref<2x8x128xf32, #tpu.memory_space<vmem>> -> memref<1x1x128xf32, #tpu.memory_space<vmem>>
    %259 = tpu.memref_squeeze %258 : memref<1x1x128xf32, #tpu.memory_space<vmem>> -> memref<1x128xf32, #tpu.memory_space<vmem>>
    %260 = tpu.memref_slice %arg11[%c0_i32_246, %c12_i32_247] : memref<2x14x!tpu.dma_semaphore, #tpu.memory_space<semaphore_mem>> -> memref<1x1x!tpu.dma_semaphore, #tpu.memory_space<semaphore_mem>>
    %261 = tpu.memref_squeeze %260 : memref<1x1x!tpu.dma_semaphore, #tpu.memory_space<semaphore_mem>> -> memref<!tpu.dma_semaphore, #tpu.memory_space<semaphore_mem>>
    tpu.wait_dma2 semaphore(%261 : memref<!tpu.dma_semaphore, #tpu.memory_space<semaphore_mem>>) src(%257 : memref<1x128xf32, #tpu.memory_space<any>>) dst(%259 : memref<1x128xf32, #tpu.memory_space<vmem>>)
    %c0_i32_251 = arith.constant 0 : i32
    %c0_i32_252 = arith.constant 0 : i32
    %c13_i32_253 = arith.constant 13 : i32
    %c0_i32_254 = arith.constant 0 : i32
    %262 = tpu.memref_slice %arg6[%29, %c0_i32_254] : memref<64x128xf32, #tpu.memory_space<any>> -> memref<1x128xf32, #tpu.memory_space<any>>
    %c7_i32_255 = arith.constant 7 : i32
    %c0_i32_256 = arith.constant 0 : i32
    %263 = tpu.memref_slice %arg10[%c0_i32_251, %c7_i32_255, %c0_i32_256] : memref<2x8x128xf32, #tpu.memory_space<vmem>> -> memref<1x1x128xf32, #tpu.memory_space<vmem>>
    %264 = tpu.memref_squeeze %263 : memref<1x1x128xf32, #tpu.memory_space<vmem>> -> memref<1x128xf32, #tpu.memory_space<vmem>>
    %265 = tpu.memref_slice %arg11[%c0_i32_252, %c13_i32_253] : memref<2x14x!tpu.dma_semaphore, #tpu.memory_space<semaphore_mem>> -> memref<1x1x!tpu.dma_semaphore, #tpu.memory_space<semaphore_mem>>
    %266 = tpu.memref_squeeze %265 : memref<1x1x!tpu.dma_semaphore, #tpu.memory_space<semaphore_mem>> -> memref<!tpu.dma_semaphore, #tpu.memory_space<semaphore_mem>>
    tpu.wait_dma2 semaphore(%266 : memref<!tpu.dma_semaphore, #tpu.memory_space<semaphore_mem>>) src(%262 : memref<1x128xf32, #tpu.memory_space<any>>) dst(%264 : memref<1x128xf32, #tpu.memory_space<vmem>>)
    %c1_i32_257 = arith.constant 1 : i32
    %c0_i32_258 = arith.constant 0 : i32
    %c0_i32_259 = arith.constant 0 : i32
    %267 = tpu.memref_slice %arg4[%33, %c0_i32_259] : memref<16x128xf32, #tpu.memory_space<any>> -> memref<1x128xf32, #tpu.memory_space<any>>
    %c1_i32_260 = arith.constant 1 : i32
    %c0_i32_261 = arith.constant 0 : i32
    %268 = tpu.memref_slice %arg8[%c1_i32_260, %c0_i32_261] : memref<2x128xf32, #tpu.memory_space<vmem>> -> memref<1x128xf32, #tpu.memory_space<vmem>>
    %269 = tpu.memref_slice %arg11[%c1_i32_257, %c0_i32_258] : memref<2x14x!tpu.dma_semaphore, #tpu.memory_space<semaphore_mem>> -> memref<1x1x!tpu.dma_semaphore, #tpu.memory_space<semaphore_mem>>
    %270 = tpu.memref_squeeze %269 : memref<1x1x!tpu.dma_semaphore, #tpu.memory_space<semaphore_mem>> -> memref<!tpu.dma_semaphore, #tpu.memory_space<semaphore_mem>>
    tpu.wait_dma2 semaphore(%270 : memref<!tpu.dma_semaphore, #tpu.memory_space<semaphore_mem>>) src(%267 : memref<1x128xf32, #tpu.memory_space<any>>) dst(%268 : memref<1x128xf32, #tpu.memory_space<vmem>>)
    %c1_i32_262 = arith.constant 1 : i32
    %c1_i32_263 = arith.constant 1 : i32
    %c1_i32_264 = arith.constant 1 : i32
    %c0_i32_265 = arith.constant 0 : i32
    %271 = tpu.memref_slice %arg5[%35, %c0_i32_265] : memref<64x128xf32, #tpu.memory_space<any>> -> memref<1x128xf32, #tpu.memory_space<any>>
    %c0_i32_266 = arith.constant 0 : i32
    %c0_i32_267 = arith.constant 0 : i32
    %272 = tpu.memref_slice %arg9[%c1_i32_262, %c0_i32_266, %c0_i32_267] : memref<2x5x128xf32, #tpu.memory_space<vmem>> -> memref<1x1x128xf32, #tpu.memory_space<vmem>>
    %273 = tpu.memref_squeeze %272 : memref<1x1x128xf32, #tpu.memory_space<vmem>> -> memref<1x128xf32, #tpu.memory_space<vmem>>
    %274 = tpu.memref_slice %arg11[%c1_i32_263, %c1_i32_264] : memref<2x14x!tpu.dma_semaphore, #tpu.memory_space<semaphore_mem>> -> memref<1x1x!tpu.dma_semaphore, #tpu.memory_space<semaphore_mem>>
    %275 = tpu.memref_squeeze %274 : memref<1x1x!tpu.dma_semaphore, #tpu.memory_space<semaphore_mem>> -> memref<!tpu.dma_semaphore, #tpu.memory_space<semaphore_mem>>
    tpu.wait_dma2 semaphore(%275 : memref<!tpu.dma_semaphore, #tpu.memory_space<semaphore_mem>>) src(%271 : memref<1x128xf32, #tpu.memory_space<any>>) dst(%273 : memref<1x128xf32, #tpu.memory_space<vmem>>)
    %c1_i32_268 = arith.constant 1 : i32
    %c1_i32_269 = arith.constant 1 : i32
    %c2_i32_270 = arith.constant 2 : i32
    %c0_i32_271 = arith.constant 0 : i32
    %276 = tpu.memref_slice %arg5[%37, %c0_i32_271] : memref<64x128xf32, #tpu.memory_space<any>> -> memref<1x128xf32, #tpu.memory_space<any>>
    %c1_i32_272 = arith.constant 1 : i32
    %c0_i32_273 = arith.constant 0 : i32
    %277 = tpu.memref_slice %arg9[%c1_i32_268, %c1_i32_272, %c0_i32_273] : memref<2x5x128xf32, #tpu.memory_space<vmem>> -> memref<1x1x128xf32, #tpu.memory_space<vmem>>
    %278 = tpu.memref_squeeze %277 : memref<1x1x128xf32, #tpu.memory_space<vmem>> -> memref<1x128xf32, #tpu.memory_space<vmem>>
    %279 = tpu.memref_slice %arg11[%c1_i32_269, %c2_i32_270] : memref<2x14x!tpu.dma_semaphore, #tpu.memory_space<semaphore_mem>> -> memref<1x1x!tpu.dma_semaphore, #tpu.memory_space<semaphore_mem>>
    %280 = tpu.memref_squeeze %279 : memref<1x1x!tpu.dma_semaphore, #tpu.memory_space<semaphore_mem>> -> memref<!tpu.dma_semaphore, #tpu.memory_space<semaphore_mem>>
    tpu.wait_dma2 semaphore(%280 : memref<!tpu.dma_semaphore, #tpu.memory_space<semaphore_mem>>) src(%276 : memref<1x128xf32, #tpu.memory_space<any>>) dst(%278 : memref<1x128xf32, #tpu.memory_space<vmem>>)
    %c1_i32_274 = arith.constant 1 : i32
    %c1_i32_275 = arith.constant 1 : i32
    %c3_i32_276 = arith.constant 3 : i32
    %c0_i32_277 = arith.constant 0 : i32
    %281 = tpu.memref_slice %arg5[%39, %c0_i32_277] : memref<64x128xf32, #tpu.memory_space<any>> -> memref<1x128xf32, #tpu.memory_space<any>>
    %c2_i32_278 = arith.constant 2 : i32
    %c0_i32_279 = arith.constant 0 : i32
    %282 = tpu.memref_slice %arg9[%c1_i32_274, %c2_i32_278, %c0_i32_279] : memref<2x5x128xf32, #tpu.memory_space<vmem>> -> memref<1x1x128xf32, #tpu.memory_space<vmem>>
    %283 = tpu.memref_squeeze %282 : memref<1x1x128xf32, #tpu.memory_space<vmem>> -> memref<1x128xf32, #tpu.memory_space<vmem>>
    %284 = tpu.memref_slice %arg11[%c1_i32_275, %c3_i32_276] : memref<2x14x!tpu.dma_semaphore, #tpu.memory_space<semaphore_mem>> -> memref<1x1x!tpu.dma_semaphore, #tpu.memory_space<semaphore_mem>>
    %285 = tpu.memref_squeeze %284 : memref<1x1x!tpu.dma_semaphore, #tpu.memory_space<semaphore_mem>> -> memref<!tpu.dma_semaphore, #tpu.memory_space<semaphore_mem>>
    tpu.wait_dma2 semaphore(%285 : memref<!tpu.dma_semaphore, #tpu.memory_space<semaphore_mem>>) src(%281 : memref<1x128xf32, #tpu.memory_space<any>>) dst(%283 : memref<1x128xf32, #tpu.memory_space<vmem>>)
    %c1_i32_280 = arith.constant 1 : i32
    %c1_i32_281 = arith.constant 1 : i32
    %c4_i32_282 = arith.constant 4 : i32
    %c0_i32_283 = arith.constant 0 : i32
    %286 = tpu.memref_slice %arg5[%41, %c0_i32_283] : memref<64x128xf32, #tpu.memory_space<any>> -> memref<1x128xf32, #tpu.memory_space<any>>
    %c3_i32_284 = arith.constant 3 : i32
    %c0_i32_285 = arith.constant 0 : i32
    %287 = tpu.memref_slice %arg9[%c1_i32_280, %c3_i32_284, %c0_i32_285] : memref<2x5x128xf32, #tpu.memory_space<vmem>> -> memref<1x1x128xf32, #tpu.memory_space<vmem>>
    %288 = tpu.memref_squeeze %287 : memref<1x1x128xf32, #tpu.memory_space<vmem>> -> memref<1x128xf32, #tpu.memory_space<vmem>>
    %289 = tpu.memref_slice %arg11[%c1_i32_281, %c4_i32_282] : memref<2x14x!tpu.dma_semaphore, #tpu.memory_space<semaphore_mem>> -> memref<1x1x!tpu.dma_semaphore, #tpu.memory_space<semaphore_mem>>
    %290 = tpu.memref_squeeze %289 : memref<1x1x!tpu.dma_semaphore, #tpu.memory_space<semaphore_mem>> -> memref<!tpu.dma_semaphore, #tpu.memory_space<semaphore_mem>>
    tpu.wait_dma2 semaphore(%290 : memref<!tpu.dma_semaphore, #tpu.memory_space<semaphore_mem>>) src(%286 : memref<1x128xf32, #tpu.memory_space<any>>) dst(%288 : memref<1x128xf32, #tpu.memory_space<vmem>>)
    %c1_i32_286 = arith.constant 1 : i32
    %c1_i32_287 = arith.constant 1 : i32
    %c5_i32_288 = arith.constant 5 : i32
    %c0_i32_289 = arith.constant 0 : i32
    %291 = tpu.memref_slice %arg5[%43, %c0_i32_289] : memref<64x128xf32, #tpu.memory_space<any>> -> memref<1x128xf32, #tpu.memory_space<any>>
    %c4_i32_290 = arith.constant 4 : i32
    %c0_i32_291 = arith.constant 0 : i32
    %292 = tpu.memref_slice %arg9[%c1_i32_286, %c4_i32_290, %c0_i32_291] : memref<2x5x128xf32, #tpu.memory_space<vmem>> -> memref<1x1x128xf32, #tpu.memory_space<vmem>>
    %293 = tpu.memref_squeeze %292 : memref<1x1x128xf32, #tpu.memory_space<vmem>> -> memref<1x128xf32, #tpu.memory_space<vmem>>
    %294 = tpu.memref_slice %arg11[%c1_i32_287, %c5_i32_288] : memref<2x14x!tpu.dma_semaphore, #tpu.memory_space<semaphore_mem>> -> memref<1x1x!tpu.dma_semaphore, #tpu.memory_space<semaphore_mem>>
    %295 = tpu.memref_squeeze %294 : memref<1x1x!tpu.dma_semaphore, #tpu.memory_space<semaphore_mem>> -> memref<!tpu.dma_semaphore, #tpu.memory_space<semaphore_mem>>
    tpu.wait_dma2 semaphore(%295 : memref<!tpu.dma_semaphore, #tpu.memory_space<semaphore_mem>>) src(%291 : memref<1x128xf32, #tpu.memory_space<any>>) dst(%293 : memref<1x128xf32, #tpu.memory_space<vmem>>)
    %c1_i32_292 = arith.constant 1 : i32
    %c1_i32_293 = arith.constant 1 : i32
    %c6_i32_294 = arith.constant 6 : i32
    %c0_i32_295 = arith.constant 0 : i32
    %296 = tpu.memref_slice %arg6[%45, %c0_i32_295] : memref<64x128xf32, #tpu.memory_space<any>> -> memref<1x128xf32, #tpu.memory_space<any>>
    %c0_i32_296 = arith.constant 0 : i32
    %c0_i32_297 = arith.constant 0 : i32
    %297 = tpu.memref_slice %arg10[%c1_i32_292, %c0_i32_296, %c0_i32_297] : memref<2x8x128xf32, #tpu.memory_space<vmem>> -> memref<1x1x128xf32, #tpu.memory_space<vmem>>
    %298 = tpu.memref_squeeze %297 : memref<1x1x128xf32, #tpu.memory_space<vmem>> -> memref<1x128xf32, #tpu.memory_space<vmem>>
    %299 = tpu.memref_slice %arg11[%c1_i32_293, %c6_i32_294] : memref<2x14x!tpu.dma_semaphore, #tpu.memory_space<semaphore_mem>> -> memref<1x1x!tpu.dma_semaphore, #tpu.memory_space<semaphore_mem>>
    %300 = tpu.memref_squeeze %299 : memref<1x1x!tpu.dma_semaphore, #tpu.memory_space<semaphore_mem>> -> memref<!tpu.dma_semaphore, #tpu.memory_space<semaphore_mem>>
    tpu.wait_dma2 semaphore(%300 : memref<!tpu.dma_semaphore, #tpu.memory_space<semaphore_mem>>) src(%296 : memref<1x128xf32, #tpu.memory_space<any>>) dst(%298 : memref<1x128xf32, #tpu.memory_space<vmem>>)
    %c1_i32_298 = arith.constant 1 : i32
    %c1_i32_299 = arith.constant 1 : i32
    %c7_i32_300 = arith.constant 7 : i32
    %c0_i32_301 = arith.constant 0 : i32
    %301 = tpu.memref_slice %arg6[%47, %c0_i32_301] : memref<64x128xf32, #tpu.memory_space<any>> -> memref<1x128xf32, #tpu.memory_space<any>>
    %c1_i32_302 = arith.constant 1 : i32
    %c0_i32_303 = arith.constant 0 : i32
    %302 = tpu.memref_slice %arg10[%c1_i32_298, %c1_i32_302, %c0_i32_303] : memref<2x8x128xf32, #tpu.memory_space<vmem>> -> memref<1x1x128xf32, #tpu.memory_space<vmem>>
    %303 = tpu.memref_squeeze %302 : memref<1x1x128xf32, #tpu.memory_space<vmem>> -> memref<1x128xf32, #tpu.memory_space<vmem>>
    %304 = tpu.memref_slice %arg11[%c1_i32_299, %c7_i32_300] : memref<2x14x!tpu.dma_semaphore, #tpu.memory_space<semaphore_mem>> -> memref<1x1x!tpu.dma_semaphore, #tpu.memory_space<semaphore_mem>>
    %305 = tpu.memref_squeeze %304 : memref<1x1x!tpu.dma_semaphore, #tpu.memory_space<semaphore_mem>> -> memref<!tpu.dma_semaphore, #tpu.memory_space<semaphore_mem>>
    tpu.wait_dma2 semaphore(%305 : memref<!tpu.dma_semaphore, #tpu.memory_space<semaphore_mem>>) src(%301 : memref<1x128xf32, #tpu.memory_space<any>>) dst(%303 : memref<1x128xf32, #tpu.memory_space<vmem>>)
    %c1_i32_304 = arith.constant 1 : i32
    %c1_i32_305 = arith.constant 1 : i32
    %c8_i32_306 = arith.constant 8 : i32
    %c0_i32_307 = arith.constant 0 : i32
    %306 = tpu.memref_slice %arg6[%49, %c0_i32_307] : memref<64x128xf32, #tpu.memory_space<any>> -> memref<1x128xf32, #tpu.memory_space<any>>
    %c2_i32_308 = arith.constant 2 : i32
    %c0_i32_309 = arith.constant 0 : i32
    %307 = tpu.memref_slice %arg10[%c1_i32_304, %c2_i32_308, %c0_i32_309] : memref<2x8x128xf32, #tpu.memory_space<vmem>> -> memref<1x1x128xf32, #tpu.memory_space<vmem>>
    %308 = tpu.memref_squeeze %307 : memref<1x1x128xf32, #tpu.memory_space<vmem>> -> memref<1x128xf32, #tpu.memory_space<vmem>>
    %309 = tpu.memref_slice %arg11[%c1_i32_305, %c8_i32_306] : memref<2x14x!tpu.dma_semaphore, #tpu.memory_space<semaphore_mem>> -> memref<1x1x!tpu.dma_semaphore, #tpu.memory_space<semaphore_mem>>
    %310 = tpu.memref_squeeze %309 : memref<1x1x!tpu.dma_semaphore, #tpu.memory_space<semaphore_mem>> -> memref<!tpu.dma_semaphore, #tpu.memory_space<semaphore_mem>>
    tpu.wait_dma2 semaphore(%310 : memref<!tpu.dma_semaphore, #tpu.memory_space<semaphore_mem>>) src(%306 : memref<1x128xf32, #tpu.memory_space<any>>) dst(%308 : memref<1x128xf32, #tpu.memory_space<vmem>>)
    %c1_i32_310 = arith.constant 1 : i32
    %c1_i32_311 = arith.constant 1 : i32
    %c9_i32_312 = arith.constant 9 : i32
    %c0_i32_313 = arith.constant 0 : i32
    %311 = tpu.memref_slice %arg6[%51, %c0_i32_313] : memref<64x128xf32, #tpu.memory_space<any>> -> memref<1x128xf32, #tpu.memory_space<any>>
    %c3_i32_314 = arith.constant 3 : i32
    %c0_i32_315 = arith.constant 0 : i32
    %312 = tpu.memref_slice %arg10[%c1_i32_310, %c3_i32_314, %c0_i32_315] : memref<2x8x128xf32, #tpu.memory_space<vmem>> -> memref<1x1x128xf32, #tpu.memory_space<vmem>>
    %313 = tpu.memref_squeeze %312 : memref<1x1x128xf32, #tpu.memory_space<vmem>> -> memref<1x128xf32, #tpu.memory_space<vmem>>
    %314 = tpu.memref_slice %arg11[%c1_i32_311, %c9_i32_312] : memref<2x14x!tpu.dma_semaphore, #tpu.memory_space<semaphore_mem>> -> memref<1x1x!tpu.dma_semaphore, #tpu.memory_space<semaphore_mem>>
    %315 = tpu.memref_squeeze %314 : memref<1x1x!tpu.dma_semaphore, #tpu.memory_space<semaphore_mem>> -> memref<!tpu.dma_semaphore, #tpu.memory_space<semaphore_mem>>
    tpu.wait_dma2 semaphore(%315 : memref<!tpu.dma_semaphore, #tpu.memory_space<semaphore_mem>>) src(%311 : memref<1x128xf32, #tpu.memory_space<any>>) dst(%313 : memref<1x128xf32, #tpu.memory_space<vmem>>)
    %c1_i32_316 = arith.constant 1 : i32
    %c1_i32_317 = arith.constant 1 : i32
    %c10_i32_318 = arith.constant 10 : i32
    %c0_i32_319 = arith.constant 0 : i32
    %316 = tpu.memref_slice %arg6[%53, %c0_i32_319] : memref<64x128xf32, #tpu.memory_space<any>> -> memref<1x128xf32, #tpu.memory_space<any>>
    %c4_i32_320 = arith.constant 4 : i32
    %c0_i32_321 = arith.constant 0 : i32
    %317 = tpu.memref_slice %arg10[%c1_i32_316, %c4_i32_320, %c0_i32_321] : memref<2x8x128xf32, #tpu.memory_space<vmem>> -> memref<1x1x128xf32, #tpu.memory_space<vmem>>
    %318 = tpu.memref_squeeze %317 : memref<1x1x128xf32, #tpu.memory_space<vmem>> -> memref<1x128xf32, #tpu.memory_space<vmem>>
    %319 = tpu.memref_slice %arg11[%c1_i32_317, %c10_i32_318] : memref<2x14x!tpu.dma_semaphore, #tpu.memory_space<semaphore_mem>> -> memref<1x1x!tpu.dma_semaphore, #tpu.memory_space<semaphore_mem>>
    %320 = tpu.memref_squeeze %319 : memref<1x1x!tpu.dma_semaphore, #tpu.memory_space<semaphore_mem>> -> memref<!tpu.dma_semaphore, #tpu.memory_space<semaphore_mem>>
    tpu.wait_dma2 semaphore(%320 : memref<!tpu.dma_semaphore, #tpu.memory_space<semaphore_mem>>) src(%316 : memref<1x128xf32, #tpu.memory_space<any>>) dst(%318 : memref<1x128xf32, #tpu.memory_space<vmem>>)
    %c1_i32_322 = arith.constant 1 : i32
    %c1_i32_323 = arith.constant 1 : i32
    %c11_i32_324 = arith.constant 11 : i32
    %c0_i32_325 = arith.constant 0 : i32
    %321 = tpu.memref_slice %arg6[%55, %c0_i32_325] : memref<64x128xf32, #tpu.memory_space<any>> -> memref<1x128xf32, #tpu.memory_space<any>>
    %c5_i32_326 = arith.constant 5 : i32
    %c0_i32_327 = arith.constant 0 : i32
    %322 = tpu.memref_slice %arg10[%c1_i32_322, %c5_i32_326, %c0_i32_327] : memref<2x8x128xf32, #tpu.memory_space<vmem>> -> memref<1x1x128xf32, #tpu.memory_space<vmem>>
    %323 = tpu.memref_squeeze %322 : memref<1x1x128xf32, #tpu.memory_space<vmem>> -> memref<1x128xf32, #tpu.memory_space<vmem>>
    %324 = tpu.memref_slice %arg11[%c1_i32_323, %c11_i32_324] : memref<2x14x!tpu.dma_semaphore, #tpu.memory_space<semaphore_mem>> -> memref<1x1x!tpu.dma_semaphore, #tpu.memory_space<semaphore_mem>>
    %325 = tpu.memref_squeeze %324 : memref<1x1x!tpu.dma_semaphore, #tpu.memory_space<semaphore_mem>> -> memref<!tpu.dma_semaphore, #tpu.memory_space<semaphore_mem>>
    tpu.wait_dma2 semaphore(%325 : memref<!tpu.dma_semaphore, #tpu.memory_space<semaphore_mem>>) src(%321 : memref<1x128xf32, #tpu.memory_space<any>>) dst(%323 : memref<1x128xf32, #tpu.memory_space<vmem>>)
    %c1_i32_328 = arith.constant 1 : i32
    %c1_i32_329 = arith.constant 1 : i32
    %c12_i32_330 = arith.constant 12 : i32
    %c0_i32_331 = arith.constant 0 : i32
    %326 = tpu.memref_slice %arg6[%57, %c0_i32_331] : memref<64x128xf32, #tpu.memory_space<any>> -> memref<1x128xf32, #tpu.memory_space<any>>
    %c6_i32_332 = arith.constant 6 : i32
    %c0_i32_333 = arith.constant 0 : i32
    %327 = tpu.memref_slice %arg10[%c1_i32_328, %c6_i32_332, %c0_i32_333] : memref<2x8x128xf32, #tpu.memory_space<vmem>> -> memref<1x1x128xf32, #tpu.memory_space<vmem>>
    %328 = tpu.memref_squeeze %327 : memref<1x1x128xf32, #tpu.memory_space<vmem>> -> memref<1x128xf32, #tpu.memory_space<vmem>>
    %329 = tpu.memref_slice %arg11[%c1_i32_329, %c12_i32_330] : memref<2x14x!tpu.dma_semaphore, #tpu.memory_space<semaphore_mem>> -> memref<1x1x!tpu.dma_semaphore, #tpu.memory_space<semaphore_mem>>
    %330 = tpu.memref_squeeze %329 : memref<1x1x!tpu.dma_semaphore, #tpu.memory_space<semaphore_mem>> -> memref<!tpu.dma_semaphore, #tpu.memory_space<semaphore_mem>>
    tpu.wait_dma2 semaphore(%330 : memref<!tpu.dma_semaphore, #tpu.memory_space<semaphore_mem>>) src(%326 : memref<1x128xf32, #tpu.memory_space<any>>) dst(%328 : memref<1x128xf32, #tpu.memory_space<vmem>>)
    %c1_i32_334 = arith.constant 1 : i32
    %c1_i32_335 = arith.constant 1 : i32
    %c13_i32_336 = arith.constant 13 : i32
    %c0_i32_337 = arith.constant 0 : i32
    %331 = tpu.memref_slice %arg6[%59, %c0_i32_337] : memref<64x128xf32, #tpu.memory_space<any>> -> memref<1x128xf32, #tpu.memory_space<any>>
    %c7_i32_338 = arith.constant 7 : i32
    %c0_i32_339 = arith.constant 0 : i32
    %332 = tpu.memref_slice %arg10[%c1_i32_334, %c7_i32_338, %c0_i32_339] : memref<2x8x128xf32, #tpu.memory_space<vmem>> -> memref<1x1x128xf32, #tpu.memory_space<vmem>>
    %333 = tpu.memref_squeeze %332 : memref<1x1x128xf32, #tpu.memory_space<vmem>> -> memref<1x128xf32, #tpu.memory_space<vmem>>
    %334 = tpu.memref_slice %arg11[%c1_i32_335, %c13_i32_336] : memref<2x14x!tpu.dma_semaphore, #tpu.memory_space<semaphore_mem>> -> memref<1x1x!tpu.dma_semaphore, #tpu.memory_space<semaphore_mem>>
    %335 = tpu.memref_squeeze %334 : memref<1x1x!tpu.dma_semaphore, #tpu.memory_space<semaphore_mem>> -> memref<!tpu.dma_semaphore, #tpu.memory_space<semaphore_mem>>
    tpu.wait_dma2 semaphore(%335 : memref<!tpu.dma_semaphore, #tpu.memory_space<semaphore_mem>>) src(%331 : memref<1x128xf32, #tpu.memory_space<any>>) dst(%333 : memref<1x128xf32, #tpu.memory_space<vmem>>)
    %c0_340 = arith.constant 0 : index
    %c0_341 = arith.constant 0 : index
    %336 = vector.load %arg8[%c0_340, %c0_341] : memref<2x128xf32, #tpu.memory_space<vmem>>, vector<2x128xf32>
    %c0_342 = arith.constant 0 : index
    %c0_343 = arith.constant 0 : index
    %c0_344 = arith.constant 0 : index
    %337 = vector.load %arg9[%c0_342, %c0_343, %c0_344] : memref<2x5x128xf32, #tpu.memory_space<vmem>>, vector<2x5x128xf32>
    %cst = arith.constant dense<0.000000e+00> : vector<2x128xf32>
    %338 = vector.multi_reduction <add>, %337, %cst [1] : vector<2x5x128xf32> to vector<2x128xf32>
    %339 = arith.addf %336, %338 : vector<2x128xf32>
    %340 = vector.shape_cast %339 : vector<2x128xf32> to vector<2x1x128xf32>
    %c0_345 = arith.constant 0 : index
    %c0_346 = arith.constant 0 : index
    %c0_347 = arith.constant 0 : index
    %341 = vector.load %arg10[%c0_345, %c0_346, %c0_347] : memref<2x8x128xf32, #tpu.memory_space<vmem>>, vector<2x8x128xf32>
    %342 = vector.broadcast %340 : vector<2x1x128xf32> to vector<2x8x128xf32>
    %343 = arith.mulf %342, %341 : vector<2x8x128xf32>
    %cst_348 = arith.constant dense<0.000000e+00> : vector<2x8xf32>
    %344 = vector.multi_reduction <add>, %343, %cst_348 [2] : vector<2x8x128xf32> to vector<2x8xf32>
    %c0_349 = arith.constant 0 : index
    %c0_350 = arith.constant 0 : index
    %c0_351 = arith.constant 0 : index
    %345 = vector.load %arg7[%c0_349, %c0_350, %c0_351] : memref<1x2x8xf32, #tpu.memory_space<vmem>>, vector<1x2x8xf32>
    %346 = vector.shape_cast %345 : vector<1x2x8xf32> to vector<2x8xf32>
    %347 = vector.shape_cast %344 : vector<2x8xf32> to vector<1x2x8xf32>
    tpu.vector_store %arg7[%c0_349, %c0_350, %c0_351], %347 {strides = array<i32>} : memref<1x2x8xf32, #tpu.memory_space<vmem>>, vector<1x2x8xf32>,
    return
  }
  func.func @transform_3(%arg0: i32, %arg1: memref<4xi32, #tpu.memory_space<smem>>, %arg2: memref<4x5xi32, #tpu.memory_space<smem>>, %arg3: memref<4x8xi32, #tpu.memory_space<smem>>) -> (i32, i32, i32) {
    %c0_i32 = arith.constant 0 : i32
    %c0_i32_0 = arith.constant 0 : i32
    %c0_i32_1 = arith.constant 0 : i32
    return %arg0, %c0_i32, %c0_i32_0 : i32, i32, i32
  }
}

</mosaic_0001>

<llo_original>
// kernel: tpu_custom_call.1
$region0: #{tpu_custom_call.1}
  #allocation0 [shape = 'u32[]', space=smem, size = 0x4, offset = 0x4, fixed_abs, tag = 'smem constant byte address 0x4 - core index']
  #allocation1 [shape = 'u32[72,128]{1,0:T(1,128)}', space=vmem, size = 0x9000, scoped, tag = 'internal scratch']
  #allocation2 [shape = 'f32[2,128]{1,0:T(2,128)}', space=vmem, size = 0x400, scoped, tag = 'scratch operand']
  #allocation3 [shape = 'f32[2,5,128]{2,1,0:T(8,128)}', space=vmem, size = 0x2000, scoped, tag = 'scratch operand']
  #allocation4 [shape = 'f32[2,8,128]{2,1,0:T(8,128)}', space=vmem, size = 0x2000, scoped, tag = 'scratch operand']
  #allocation5 [shape = 's32[28]{0}', space=sflag, size = 0x70, scoped, tag = 'scratch operand']
  #allocation6 [shape = 's32[1]{0}', space=sflag, size = 0x4, scoped, tag = 'scoped memory for tpu_custom_call.1']
  #allocation7 [shape = 'u8[512]{0}', space=smem, size = 0x200, scoped, tag = 'prefetched SMEM operand 0']
  #allocation8 [shape = 'u8[2048]{0}', space=smem, size = 0x800, scoped, tag = 'prefetched SMEM operand 1']
  #allocation9 [shape = 'u8[2048]{0}', space=smem, size = 0x800, scoped, tag = 'prefetched SMEM operand 2']
  #allocation12 [shape = 's32[]', space=sflag, size = 0x4, offset = 0, fixed_abs, tag = 'sflag constant byte address 0x0 - dummy sync flag']
  #allocation13 [shape = 's32[]', space=sflag, size = 0x4, offset = 0, fixed_abs, tag = 'sflag constant byte address 0x0 - dummy sync flag']
  #allocation14 [shape = 'u32[]', space=smem, size = 0x4, offset = 0x44, fixed_abs, tag = 'smem constant byte address 0x44 - assertion arg 0']
  #allocation15 [shape = 'u32[]', space=smem, size = 0x4, offset = 0x48, fixed_abs, tag = 'smem constant byte address 0x48 - assertion arg 1']
  #allocation16 [shape = 's32[]', space=sflag, size = 0x4, offset = 0, fixed_abs, tag = 'sflag constant byte address 0x0 - dummy sync flag']
  #allocation17 [shape = 's32[]', space=sflag, size = 0x4, offset = 0, fixed_abs, tag = 'sflag constant byte address 0x0 - dummy sync flag']
  #allocation18 [shape = 's32[]', space=sflag, size = 0x4, offset = 0, fixed_abs, tag = 'sflag constant byte address 0x0 - dummy sync flag']
  #allocation19 [shape = 's32[]', space=sflag, size = 0x4, offset = 0, fixed_abs, tag = 'sflag constant byte address 0x0 - dummy sync flag']
  #allocation20 [shape = 's32[]', space=sflag, size = 0x4, offset = 0, fixed_abs, tag = 'sflag constant byte address 0x0 - dummy sync flag']
  #allocation21 [shape = 's32[]', space=sflag, size = 0x4, offset = 0, fixed_abs, tag = 'sflag constant byte address 0x0 - dummy sync flag']
  #allocation22 [shape = 's32[]', space=sflag, size = 0x4, offset = 0, fixed_abs, tag = 'sflag constant byte address 0x0 - dummy sync flag']
  #allocation23 [shape = 's32[]', space=sflag, size = 0x4, offset = 0, fixed_abs, tag = 'sflag constant byte address 0x0 - dummy sync flag']
  #allocation24 [shape = 's32[]', space=sflag, size = 0x4, offset = 0, fixed_abs, tag = 'sflag constant byte address 0x0 - dummy sync flag']
  #allocation25 [shape = 's32[]', space=sflag, size = 0x4, offset = 0, fixed_abs, tag = 'sflag constant byte address 0x0 - dummy sync flag']
  #allocation26 [shape = 's32[]', space=sflag, size = 0x4, offset = 0, fixed_abs, tag = 'sflag constant byte address 0x0 - dummy sync flag']
  #allocation27 [shape = 's32[]', space=sflag, size = 0x4, offset = 0, fixed_abs, tag = 'sflag constant byte address 0x0 - dummy sync flag']
  #allocation28 [shape = 's32[]', space=sflag, size = 0x4, offset = 0, fixed_abs, tag = 'sflag constant byte address 0x0 - dummy sync flag']
  #allocation29 [shape = 's32[]', space=sflag, size = 0x4, offset = 0, fixed_abs, tag = 'sflag constant byte address 0x0 - dummy sync flag']
  #allocation30 [shape = 's32[]', space=sflag, size = 0x4, offset = 0, fixed_abs, tag = 'sflag constant byte address 0x0 - dummy sync flag']
  #allocation31 [shape = 's32[]', space=sflag, size = 0x4, offset = 0, fixed_abs, tag = 'sflag constant byte address 0x0 - dummy sync flag']
  #allocation32 [shape = 's32[]', space=sflag, size = 0x4, offset = 0, fixed_abs, tag = 'sflag constant byte address 0x0 - dummy sync flag']
  #allocation33 [shape = 's32[]', space=sflag, size = 0x4, offset = 0, fixed_abs, tag = 'sflag constant byte address 0x0 - dummy sync flag']
  #allocation34 [shape = 's32[]', space=sflag, size = 0x4, offset = 0, fixed_abs, tag = 'sflag constant byte address 0x0 - dummy sync flag']
  #allocation35 [shape = 's32[]', space=sflag, size = 0x4, offset = 0, fixed_abs, tag = 'sflag constant byte address 0x0 - dummy sync flag']
  #allocation36 [shape = 's32[]', space=sflag, size = 0x4, offset = 0, fixed_abs, tag = 'sflag constant byte address 0x0 - dummy sync flag']
  #allocation37 [shape = 's32[]', space=sflag, size = 0x4, offset = 0, fixed_abs, tag = 'sflag constant byte address 0x0 - dummy sync flag']
  #allocation38 [shape = 's32[]', space=sflag, size = 0x4, offset = 0, fixed_abs, tag = 'sflag constant byte address 0x0 - dummy sync flag']
  #allocation39 [shape = 's32[]', space=sflag, size = 0x4, offset = 0, fixed_abs, tag = 'sflag constant byte address 0x0 - dummy sync flag']
  #allocation40 [shape = 's32[]', space=sflag, size = 0x4, offset = 0, fixed_abs, tag = 'sflag constant byte address 0x0 - dummy sync flag']
  #allocation41 [shape = 's32[]', space=sflag, size = 0x4, offset = 0, fixed_abs, tag = 'sflag constant byte address 0x0 - dummy sync flag']
  #allocation42 [shape = 's32[]', space=sflag, size = 0x4, offset = 0, fixed_abs, tag = 'sflag constant byte address 0x0 - dummy sync flag']
  #allocation43 [shape = 's32[]', space=sflag, size = 0x4, offset = 0, fixed_abs, tag = 'sflag constant byte address 0x0 - dummy sync flag']
  #allocation44 [shape = 's32[]', space=sflag, size = 0x4, offset = 0, fixed_abs, tag = 'sflag constant byte address 0x0 - dummy sync flag']
  #allocation45 [shape = 's32[]', space=sflag, size = 0x4, offset = 0, fixed_abs, tag = 'sflag constant byte address 0x0 - dummy sync flag']
  #allocation46 [shape = 's32[]', space=sflag, size = 0x4, offset = 0, fixed_abs, tag = 'sflag constant byte address 0x0 - dummy sync flag']
  #allocation47 [shape = 's32[]', space=sflag, size = 0x4, offset = 0, fixed_abs, tag = 'sflag constant byte address 0x0 - dummy sync flag']
  #allocation48 [shape = 's32[]', space=sflag, size = 0x4, offset = 0, fixed_abs, tag = 'sflag constant byte address 0x0 - dummy sync flag']
  #allocation49 [shape = 's32[]', space=sflag, size = 0x4, offset = 0, fixed_abs, tag = 'sflag constant byte address 0x0 - dummy sync flag']
  #allocation50 [shape = 's32[]', space=sflag, size = 0x4, offset = 0, fixed_abs, tag = 'sflag constant byte address 0x0 - dummy sync flag']
  #allocation51 [shape = 's32[]', space=sflag, size = 0x4, offset = 0, fixed_abs, tag = 'sflag constant byte address 0x0 - dummy sync flag']
  #allocation52 [shape = 's32[]', space=sflag, size = 0x4, offset = 0, fixed_abs, tag = 'sflag constant byte address 0x0 - dummy sync flag']
  #allocation53 [shape = 's32[]', space=sflag, size = 0x4, offset = 0, fixed_abs, tag = 'sflag constant byte address 0x0 - dummy sync flag']
  #allocation54 [shape = 's32[]', space=sflag, size = 0x4, offset = 0, fixed_abs, tag = 'sflag constant byte address 0x0 - dummy sync flag']
  #allocation55 [shape = 's32[]', space=sflag, size = 0x4, offset = 0, fixed_abs, tag = 'sflag constant byte address 0x0 - dummy sync flag']
  #allocation56 [shape = 's32[]', space=sflag, size = 0x4, offset = 0, fixed_abs, tag = 'sflag constant byte address 0x0 - dummy sync flag']
  #allocation57 [shape = 's32[]', space=sflag, size = 0x4, offset = 0, fixed_abs, tag = 'sflag constant byte address 0x0 - dummy sync flag']
  #allocation58 [shape = 's32[]', space=sflag, size = 0x4, offset = 0, fixed_abs, tag = 'sflag constant byte address 0x0 - dummy sync flag']
  #allocation59 [shape = 's32[]', space=sflag, size = 0x4, offset = 0, fixed_abs, tag = 'sflag constant byte address 0x0 - dummy sync flag']
  #allocation60 [shape = 's32[]', space=sflag, size = 0x4, offset = 0, fixed_abs, tag = 'sflag constant byte address 0x0 - dummy sync flag']
  #allocation61 [shape = 's32[]', space=sflag, size = 0x4, offset = 0, fixed_abs, tag = 'sflag constant byte address 0x0 - dummy sync flag']
  #allocation62 [shape = 's32[]', space=sflag, size = 0x4, offset = 0, fixed_abs, tag = 'sflag constant byte address 0x0 - dummy sync flag']
  #allocation63 [shape = 's32[]', space=sflag, size = 0x4, offset = 0, fixed_abs, tag = 'sflag constant byte address 0x0 - dummy sync flag']
  #allocation64 [shape = 's32[]', space=sflag, size = 0x4, offset = 0, fixed_abs, tag = 'sflag constant byte address 0x0 - dummy sync flag']
  #allocation65 [shape = 's32[]', space=sflag, size = 0x4, offset = 0, fixed_abs, tag = 'sflag constant byte address 0x0 - dummy sync flag']
  #allocation66 [shape = 's32[]', space=sflag, size = 0x4, offset = 0, fixed_abs, tag = 'sflag constant byte address 0x0 - dummy sync flag']
  #allocation67 [shape = 's32[]', space=sflag, size = 0x4, offset = 0, fixed_abs, tag = 'sflag constant byte address 0x0 - dummy sync flag']
  #allocation68 [shape = 's32[]', space=sflag, size = 0x4, offset = 0, fixed_abs, tag = 'sflag constant byte address 0x0 - dummy sync flag']
  #allocation69 [shape = 's32[]', space=sflag, size = 0x4, offset = 0, fixed_abs, tag = 'sflag constant byte address 0x0 - dummy sync flag']
  %s0 = inlined_call_operand.hbm [shape: s32[4], index: 0, kind: input, shape index: {}]
  %s1 = inlined_call_operand.hbm [shape: s32[4,5], index: 1, kind: input, shape index: {}]
  %s2 = inlined_call_operand.hbm [shape: s32[4,8], index: 2, kind: input, shape index: {}]
  %s3 = inlined_call_operand.hbm [shape: f32[16,128], index: 3, kind: input, shape index: {}]
  %s4 = inlined_call_operand.hbm [shape: f32[64,128], index: 4, kind: input, shape index: {}]
  %s5 = inlined_call_operand.hbm [shape: f32[64,128], index: 5, kind: input, shape index: {}]
  %s6 = inlined_call_operand.hbm [shape: f32[2,2,8], index: 6, kind: output, shape index: {}]
  %s7 = sld [smem:[#allocation0]]
  $region137: #{tpu_custom_call.1} parent=0
    _
  %s9 = ssub.s32 1, %s7
  %s10 = scalar_select 0, %s9, %s7
  %s12 = sshll.u32 %s0, 4
  %s13 = int_to_ptr.hbm [resolvable:$true] %s12
  %15 = dma.hbm_to_smem %s13, 16, [#allocation7], [#allocation6]
  %s17 = sshll.u32 %s1, 4
  %s18 = int_to_ptr.hbm [resolvable:$true] %s17
  %20 = dma.hbm_to_smem %s18, 64, [#allocation8], [#allocation6]
  %s22 = sshll.u32 %s2, 4
  %s23 = int_to_ptr.hbm [resolvable:$true] %s22
  %25 = dma.hbm_to_smem %s23, 64, [#allocation9], [#allocation6]
  %27 = dma.done [#allocation6], 144
  %28 = sfence
  $region1: #{tpu_custom_call.1} parent=0
    #allocation10 [shape = 'u8[2048]{0}', space=vmem, size = 0x800, scoped, tag = 'output window, operand 0']
    #allocation11 [shape = 's32[2]{0}', space=sflag, size = 0x8, scoped, tag = 'scoped memory for tpu_custom_call.1']
    %29 = vsyncpa [#allocation11], 0
    %s30 = scalar_lea.sflag [#allocation11], 1
    %31 = vsyncpa %s30, 0
    loop: start=0, step=1, limit=3
    $region2: #{tpu_custom_call.1} parent=1 // loop_pre_header
      _
    $region3: #{tpu_custom_call.1} parent=1 // loop_header
      %s33 = sphi 0, %s37
      %p34 = scmp.ge.s32.totalorder %s33, 3
      %s42 = sphi 0, %s44
      %s45 = sphi 0, %s42
      %s55 = sphi 0, %s45
    $region4: #{tpu_custom_call.1} parent=1 // loop_header_branch
      %36 = sbr.rel (%p34) target = $region8
    $region5: #{tpu_custom_call.1} parent=1 // loop_body
      %s38 = ssub.s32 %s33, 1
      %s39 = sadd.s32 %s33, 1
      %s40 = ssub.s32 %s33, %s39
      %p41 = scmp.eq.s32.totalorder %s40, 0
      %s43 = sadd.s32 %s42, 1
      %s44 = scalar_select %p41, %s42, %s43
      %p46 = pneg %p41
      %p47 = scmp.eq.s32.totalorder %s33, 1
      %p48 = por %p46, %p47
      %p49 = scmp.ne.s32.totalorder %s42, %s45
      %p50 = scmp.eq.s32.totalorder %s33, 0
      %p51 = por %p49, %p50
      %p52 = scmp.ne.s32.totalorder %s42, %s45
      %p53 = scmp.eq.s32.totalorder %s38, 1
      %p54 = por %p52, %p53
      %p56 = scmp.ne.s32.totalorder %s45, %s55
      %p57 = scmp.eq.s32.totalorder %s38, 0
      %p58 = por %p56, %p57
      %p59 = scmp.lt.s32.totalorder %s33, 2
      // Predicated region
      $region9: #{tpu_custom_call.1} parent=5 // pred_check
        %p60 = pneg %p59
      $region10: #{tpu_custom_call.1} parent=5 // pred_check_branch
        %62 = sbr.rel (%p60) target = $region12
      $region11: #{tpu_custom_call.1} parent=5 // pred_region
        %p63 = pneg %p51
        %p64 = pneg %p48
        %s65 = sand.u32 %s42, 1
        %s66 = scalar_lea.sflag [#allocation11], %s65
        %s67 = sand.u32 %s42, 1
        %s68 = smul.addr %s67, 2
        %s69 = scalar_lea.vmem [#allocation10], %s68
        %s70 = smul.u32 %s33, 2
        %s71 = sld [smem:[#allocation7 + %s70]]
        %s72 = smul.u32 %s70, 128
        %s73 = sld [smem:[#allocation8 + %s72]]
        %s74 = sadd.s32 %s72, 1
        %s75 = sld [smem:[#allocation8 + %s74]]
        %s76 = sadd.s32 %s72, 2
        %s77 = sld [smem:[#allocation8 + %s76]]
        %s78 = sadd.s32 %s72, 3
        %s79 = sld [smem:[#allocation8 + %s78]]
        %s80 = sadd.s32 %s72, 4
        %s81 = sld [smem:[#allocation8 + %s80]]
        %s82 = sld [smem:[#allocation9 + %s72]]
        %s83 = sld [smem:[#allocation9 + %s74]]
        %s84 = sld [smem:[#allocation9 + %s76]]
        %s85 = sld [smem:[#allocation9 + %s78]]
        %s86 = sld [smem:[#allocation9 + %s80]]
        %s87 = sadd.s32 %s72, 5
        %s88 = sld [smem:[#allocation9 + %s87]]
        %s89 = sadd.s32 %s72, 6
        %s90 = sld [smem:[#allocation9 + %s89]]
        %s91 = sadd.s32 %s72, 7
        %s92 = sld [smem:[#allocation9 + %s91]]
        %s93 = sadd.s32 %s70, 1
        %s94 = sld [smem:[#allocation7 + %s93]]
        %s95 = smul.u32 %s93, 128
        %s96 = sld [smem:[#allocation8 + %s95]]
        %s97 = sadd.s32 %s95, 1
        %s98 = sld [smem:[#allocation8 + %s97]]
        %s99 = sadd.s32 %s95, 2
        %s100 = sld [smem:[#allocation8 + %s99]]
        %s101 = sadd.s32 %s95, 3
        %s102 = sld [smem:[#allocation8 + %s101]]
        %s103 = sadd.s32 %s95, 4
        %s104 = sld [smem:[#allocation8 + %s103]]
        %s105 = sld [smem:[#allocation9 + %s95]]
        %s106 = sld [smem:[#allocation9 + %s97]]
        %s107 = sld [smem:[#allocation9 + %s99]]
        %s108 = sld [smem:[#allocation9 + %s101]]
        %s109 = sld [smem:[#allocation9 + %s103]]
        %s110 = sadd.s32 %s95, 5
        %s111 = sld [smem:[#allocation9 + %s110]]
        %s112 = sadd.s32 %s95, 6
        %s113 = sld [smem:[#allocation9 + %s112]]
        %s114 = sadd.s32 %s95, 7
        %s115 = sld [smem:[#allocation9 + %s114]]
        %s116 = scalar_lea.hbm %s3, %s71
        // Predicated region
        $region13: #{tpu_custom_call.1} parent=11 // pred_check
          _
        $region14: #{tpu_custom_call.1} parent=11 // pred_check_branch
          %118 = sbr.rel target = $region16
        $region15: #{tpu_custom_call.1} parent=11 // pred_region
          %119 = sst [smem:[#allocation14]] [#allocation13]
          %120 = sst [smem:[#allocation15]] [#allocation12]
        $region16: #{tpu_custom_call.1} parent=11 // pred_fallthru
          _
        %122 = shalt.err (0)
        %s124 = sshll.u32 %s116, 4
        %s125 = int_to_ptr.hbm [resolvable:$true] %s124
        %s126 = sshll.u32 [#allocation2], 4
        %s127 = int_to_ptr.vmem [resolvable:$true] %s126
        %129 = dma.hbm_to_vmem [thread:$0]  %s125, 16, %s127, [#allocation5]
        %s130 = scalar_lea.hbm %s4, %s73
        %s131 = scalar_lea.sflag [#allocation5], 1
        // Predicated region
        $region17: #{tpu_custom_call.1} parent=11 // pred_check
          _
        $region18: #{tpu_custom_call.1} parent=11 // pred_check_branch
          %133 = sbr.rel target = $region20
        $region19: #{tpu_custom_call.1} parent=11 // pred_region
          %134 = sst [smem:[#allocation14]] [#allocation17]
          %135 = sst [smem:[#allocation15]] [#allocation16]
        $region20: #{tpu_custom_call.1} parent=11 // pred_fallthru
          _
        %137 = shalt.err (0)
        %s139 = sshll.u32 %s130, 4
        %s140 = int_to_ptr.hbm [resolvable:$true] %s139
        %s141 = sshll.u32 [#allocation3], 4
        %s142 = int_to_ptr.vmem [resolvable:$true] %s141
        %144 = dma.hbm_to_vmem [thread:$0]  %s140, 16, %s142, %s131
        %s145 = scalar_lea.hbm %s4, %s75
        %s146 = scalar_lea.vmem [#allocation3], 1
        %s147 = scalar_lea.sflag [#allocation5], 2
        // Predicated region
        $region21: #{tpu_custom_call.1} parent=11 // pred_check
          _
        $region22: #{tpu_custom_call.1} parent=11 // pred_check_branch
          %149 = sbr.rel target = $region24
        $region23: #{tpu_custom_call.1} parent=11 // pred_region
          %150 = sst [smem:[#allocation14]] [#allocation19]
          %151 = sst [smem:[#allocation15]] [#allocation18]
        $region24: #{tpu_custom_call.1} parent=11 // pred_fallthru
          _
        %153 = shalt.err (0)
        %s155 = sshll.u32 %s145, 4
        %s156 = int_to_ptr.hbm [resolvable:$true] %s155
        %s157 = sshll.u32 %s146, 4
        %s158 = int_to_ptr.vmem [resolvable:$true] %s157
        %160 = dma.hbm_to_vmem [thread:$0]  %s156, 16, %s158, %s147
        %s161 = scalar_lea.hbm %s4, %s77
        %s162 = scalar_lea.vmem [#allocation3], 2
        %s163 = scalar_lea.sflag [#allocation5], 3
        // Predicated region
        $region25: #{tpu_custom_call.1} parent=11 // pred_check
          _
        $region26: #{tpu_custom_call.1} parent=11 // pred_check_branch
          %165 = sbr.rel target = $region28
        $region27: #{tpu_custom_call.1} parent=11 // pred_region
          %166 = sst [smem:[#allocation14]] [#allocation21]
          %167 = sst [smem:[#allocation15]] [#allocation20]
        $region28: #{tpu_custom_call.1} parent=11 // pred_fallthru
          _
        %169 = shalt.err (0)
        %s171 = sshll.u32 %s161, 4
        %s172 = int_to_ptr.hbm [resolvable:$true] %s171
        %s173 = sshll.u32 %s162, 4
        %s174 = int_to_ptr.vmem [resolvable:$true] %s173
        %176 = dma.hbm_to_vmem [thread:$0]  %s172, 16, %s174, %s163
        %s177 = scalar_lea.hbm %s4, %s79
        %s178 = scalar_lea.vmem [#allocation3], 3
        %s179 = scalar_lea.sflag [#allocation5], 4
        // Predicated region
        $region29: #{tpu_custom_call.1} parent=11 // pred_check
          _
        $region30: #{tpu_custom_call.1} parent=11 // pred_check_branch
          %181 = sbr.rel target = $region32
        $region31: #{tpu_custom_call.1} parent=11 // pred_region
          %182 = sst [smem:[#allocation14]] [#allocation23]
          %183 = sst [smem:[#allocation15]] [#allocation22]
        $region32: #{tpu_custom_call.1} parent=11 // pred_fallthru
          _
        %185 = shalt.err (0)
        %s187 = sshll.u32 %s177, 4
        %s188 = int_to_ptr.hbm [resolvable:$true] %s187
        %s189 = sshll.u32 %s178, 4
        %s190 = int_to_ptr.vmem [resolvable:$true] %s189
        %192 = dma.hbm_to_vmem [thread:$0]  %s188, 16, %s190, %s179
        %s193 = scalar_lea.hbm %s4, %s81
        %s194 = scalar_lea.vmem [#allocation3], 4
        %s195 = scalar_lea.sflag [#allocation5], 5
        // Predicated region
        $region33: #{tpu_custom_call.1} parent=11 // pred_check
          _
        $region34: #{tpu_custom_call.1} parent=11 // pred_check_branch
          %197 = sbr.rel target = $region36
        $region35: #{tpu_custom_call.1} parent=11 // pred_region
          %198 = sst [smem:[#allocation14]] [#allocation25]
          %199 = sst [smem:[#allocation15]] [#allocation24]
        $region36: #{tpu_custom_call.1} parent=11 // pred_fallthru
          _
        %201 = shalt.err (0)
        %s203 = sshll.u32 %s193, 4
        %s204 = int_to_ptr.hbm [resolvable:$true] %s203
        %s205 = sshll.u32 %s194, 4
        %s206 = int_to_ptr.vmem [resolvable:$true] %s205
        %208 = dma.hbm_to_vmem [thread:$0]  %s204, 16, %s206, %s195
        %s209 = scalar_lea.hbm %s5, %s82
        %s210 = scalar_lea.sflag [#allocation5], 6
        // Predicated region
        $region37: #{tpu_custom_call.1} parent=11 // pred_check
          _
        $region38: #{tpu_custom_call.1} parent=11 // pred_check_branch
          %212 = sbr.rel target = $region40
        $region39: #{tpu_custom_call.1} parent=11 // pred_region
          %213 = sst [smem:[#allocation14]] [#allocation27]
          %214 = sst [smem:[#allocation15]] [#allocation26]
        $region40: #{tpu_custom_call.1} parent=11 // pred_fallthru
          _
        %216 = shalt.err (0)
        %s218 = sshll.u32 %s209, 4
        %s219 = int_to_ptr.hbm [resolvable:$true] %s218
        %s220 = sshll.u32 [#allocation4], 4
        %s221 = int_to_ptr.vmem [resolvable:$true] %s220
        %223 = dma.hbm_to_vmem [thread:$0]  %s219, 16, %s221, %s210
        %s224 = scalar_lea.hbm %s5, %s83
        %s225 = scalar_lea.vmem [#allocation4], 1
        %s226 = scalar_lea.sflag [#allocation5], 7
        // Predicated region
        $region41: #{tpu_custom_call.1} parent=11 // pred_check
          _
        $region42: #{tpu_custom_call.1} parent=11 // pred_check_branch
          %228 = sbr.rel target = $region44
        $region43: #{tpu_custom_call.1} parent=11 // pred_region
          %229 = sst [smem:[#allocation14]] [#allocation29]
          %230 = sst [smem:[#allocation15]] [#allocation28]
        $region44: #{tpu_custom_call.1} parent=11 // pred_fallthru
          _
        %232 = shalt.err (0)
        %s234 = sshll.u32 %s224, 4
        %s235 = int_to_ptr.hbm [resolvable:$true] %s234
        %s236 = sshll.u32 %s225, 4
        %s237 = int_to_ptr.vmem [resolvable:$true] %s236
        %239 = dma.hbm_to_vmem [thread:$0]  %s235, 16, %s237, %s226
        %s240 = scalar_lea.hbm %s5, %s84
        %s241 = scalar_lea.vmem [#allocation4], 2
        %s242 = scalar_lea.sflag [#allocation5], 8
        // Predicated region
        $region45: #{tpu_custom_call.1} parent=11 // pred_check
          _
        $region46: #{tpu_custom_call.1} parent=11 // pred_check_branch
          %244 = sbr.rel target = $region48
        $region47: #{tpu_custom_call.1} parent=11 // pred_region
          %245 = sst [smem:[#allocation14]] [#allocation31]
          %246 = sst [smem:[#allocation15]] [#allocation30]
        $region48: #{tpu_custom_call.1} parent=11 // pred_fallthru
          _
        %248 = shalt.err (0)
        %s250 = sshll.u32 %s240, 4
        %s251 = int_to_ptr.hbm [resolvable:$true] %s250
        %s252 = sshll.u32 %s241, 4
        %s253 = int_to_ptr.vmem [resolvable:$true] %s252
        %255 = dma.hbm_to_vmem [thread:$0]  %s251, 16, %s253, %s242
        %s256 = scalar_lea.hbm %s5, %s85
        %s257 = scalar_lea.vmem [#allocation4], 3
        %s258 = scalar_lea.sflag [#allocation5], 9
        // Predicated region
        $region49: #{tpu_custom_call.1} parent=11 // pred_check
          _
        $region50: #{tpu_custom_call.1} parent=11 // pred_check_branch
          %260 = sbr.rel target = $region52
        $region51: #{tpu_custom_call.1} parent=11 // pred_region
          %261 = sst [smem:[#allocation14]] [#allocation33]
          %262 = sst [smem:[#allocation15]] [#allocation32]
        $region52: #{tpu_custom_call.1} parent=11 // pred_fallthru
          _
        %264 = shalt.err (0)
        %s266 = sshll.u32 %s256, 4
        %s267 = int_to_ptr.hbm [resolvable:$true] %s266
        %s268 = sshll.u32 %s257, 4
        %s269 = int_to_ptr.vmem [resolvable:$true] %s268
        %271 = dma.hbm_to_vmem [thread:$0]  %s267, 16, %s269, %s258
        %s272 = scalar_lea.hbm %s5, %s86
        %s273 = scalar_lea.vmem [#allocation4], 4
        %s274 = scalar_lea.sflag [#allocation5], 10
        // Predicated region
        $region53: #{tpu_custom_call.1} parent=11 // pred_check
          _
        $region54: #{tpu_custom_call.1} parent=11 // pred_check_branch
          %276 = sbr.rel target = $region56
        $region55: #{tpu_custom_call.1} parent=11 // pred_region
          %277 = sst [smem:[#allocation14]] [#allocation35]
          %278 = sst [smem:[#allocation15]] [#allocation34]
        $region56: #{tpu_custom_call.1} parent=11 // pred_fallthru
          _
        %280 = shalt.err (0)
        %s282 = sshll.u32 %s272, 4
        %s283 = int_to_ptr.hbm [resolvable:$true] %s282
        %s284 = sshll.u32 %s273, 4
        %s285 = int_to_ptr.vmem [resolvable:$true] %s284
        %287 = dma.hbm_to_vmem [thread:$0]  %s283, 16, %s285, %s274
        %s288 = scalar_lea.hbm %s5, %s88
        %s289 = scalar_lea.vmem [#allocation4], 5
        %s290 = scalar_lea.sflag [#allocation5], 11
        // Predicated region
        $region57: #{tpu_custom_call.1} parent=11 // pred_check
          _
        $region58: #{tpu_custom_call.1} parent=11 // pred_check_branch
          %292 = sbr.rel target = $region60
        $region59: #{tpu_custom_call.1} parent=11 // pred_region
          %293 = sst [smem:[#allocation14]] [#allocation37]
          %294 = sst [smem:[#allocation15]] [#allocation36]
        $region60: #{tpu_custom_call.1} parent=11 // pred_fallthru
          _
        %296 = shalt.err (0)
        %s298 = sshll.u32 %s288, 4
        %s299 = int_to_ptr.hbm [resolvable:$true] %s298
        %s300 = sshll.u32 %s289, 4
        %s301 = int_to_ptr.vmem [resolvable:$true] %s300
        %303 = dma.hbm_to_vmem [thread:$0]  %s299, 16, %s301, %s290
        %s304 = scalar_lea.hbm %s5, %s90
        %s305 = scalar_lea.vmem [#allocation4], 6
        %s306 = scalar_lea.sflag [#allocation5], 12
        // Predicated region
        $region61: #{tpu_custom_call.1} parent=11 // pred_check
          _
        $region62: #{tpu_custom_call.1} parent=11 // pred_check_branch
          %308 = sbr.rel target = $region64
        $region63: #{tpu_custom_call.1} parent=11 // pred_region
          %309 = sst [smem:[#allocation14]] [#allocation39]
          %310 = sst [smem:[#allocation15]] [#allocation38]
        $region64: #{tpu_custom_call.1} parent=11 // pred_fallthru
          _
        %312 = shalt.err (0)
        %s314 = sshll.u32 %s304, 4
        %s315 = int_to_ptr.hbm [resolvable:$true] %s314
        %s316 = sshll.u32 %s305, 4
        %s317 = int_to_ptr.vmem [resolvable:$true] %s316
        %319 = dma.hbm_to_vmem [thread:$0]  %s315, 16, %s317, %s306
        %s320 = scalar_lea.hbm %s5, %s92
        %s321 = scalar_lea.vmem [#allocation4], 7
        %s322 = scalar_lea.sflag [#allocation5], 13
        // Predicated region
        $region65: #{tpu_custom_call.1} parent=11 // pred_check
          _
        $region66: #{tpu_custom_call.1} parent=11 // pred_check_branch
          %324 = sbr.rel target = $region68
        $region67: #{tpu_custom_call.1} parent=11 // pred_region
          %325 = sst [smem:[#allocation14]] [#allocation41]
          %326 = sst [smem:[#allocation15]] [#allocation40]
        $region68: #{tpu_custom_call.1} parent=11 // pred_fallthru
          _
        %328 = shalt.err (0)
        %s330 = sshll.u32 %s320, 4
        %s331 = int_to_ptr.hbm [resolvable:$true] %s330
        %s332 = sshll.u32 %s321, 4
        %s333 = int_to_ptr.vmem [resolvable:$true] %s332
        %335 = dma.hbm_to_vmem [thread:$0]  %s331, 16, %s333, %s322
        %s336 = scalar_lea.hbm %s3, %s94
        %s337 = scalar_lea.vmem [#allocation2], 1
        %s338 = scalar_lea.sflag [#allocation5], 14
        // Predicated region
        $region69: #{tpu_custom_call.1} parent=11 // pred_check
          _
        $region70: #{tpu_custom_call.1} parent=11 // pred_check_branch
          %340 = sbr.rel target = $region72
        $region71: #{tpu_custom_call.1} parent=11 // pred_region
          %341 = sst [smem:[#allocation14]] [#allocation43]
          %342 = sst [smem:[#allocation15]] [#allocation42]
        $region72: #{tpu_custom_call.1} parent=11 // pred_fallthru
          _
        %344 = shalt.err (0)
        %s346 = sshll.u32 %s336, 4
        %s347 = int_to_ptr.hbm [resolvable:$true] %s346
        %s348 = sshll.u32 %s337, 4
        %s349 = int_to_ptr.vmem [resolvable:$true] %s348
        %351 = dma.hbm_to_vmem [thread:$0]  %s347, 16, %s349, %s338
        %s352 = scalar_lea.hbm %s4, %s96
        %s353 = scalar_lea.vmem [#allocation3], 8
        %s354 = scalar_lea.sflag [#allocation5], 15
        // Predicated region
        $region73: #{tpu_custom_call.1} parent=11 // pred_check
          _
        $region74: #{tpu_custom_call.1} parent=11 // pred_check_branch
          %356 = sbr.rel target = $region76
        $region75: #{tpu_custom_call.1} parent=11 // pred_region
          %357 = sst [smem:[#allocation14]] [#allocation45]
          %358 = sst [smem:[#allocation15]] [#allocation44]
        $region76: #{tpu_custom_call.1} parent=11 // pred_fallthru
          _
        %360 = shalt.err (0)
        %s362 = sshll.u32 %s352, 4
        %s363 = int_to_ptr.hbm [resolvable:$true] %s362
        %s364 = sshll.u32 %s353, 4
        %s365 = int_to_ptr.vmem [resolvable:$true] %s364
        %367 = dma.hbm_to_vmem [thread:$0]  %s363, 16, %s365, %s354
        %s368 = scalar_lea.hbm %s4, %s98
        %s369 = scalar_lea.vmem [#allocation3], 9
        %s370 = scalar_lea.sflag [#allocation5], 16
        // Predicated region
        $region77: #{tpu_custom_call.1} parent=11 // pred_check
          _
        $region78: #{tpu_custom_call.1} parent=11 // pred_check_branch
          %372 = sbr.rel target = $region80
        $region79: #{tpu_custom_call.1} parent=11 // pred_region
          %373 = sst [smem:[#allocation14]] [#allocation47]
          %374 = sst [smem:[#allocation15]] [#allocation46]
        $region80: #{tpu_custom_call.1} parent=11 // pred_fallthru
          _
        %376 = shalt.err (0)
        %s378 = sshll.u32 %s368, 4
        %s379 = int_to_ptr.hbm [resolvable:$true] %s378
        %s380 = sshll.u32 %s369, 4
        %s381 = int_to_ptr.vmem [resolvable:$true] %s380
        %383 = dma.hbm_to_vmem [thread:$0]  %s379, 16, %s381, %s370
        %s384 = scalar_lea.hbm %s4, %s100
        %s385 = scalar_lea.vmem [#allocation3], 10
        %s386 = scalar_lea.sflag [#allocation5], 17
        // Predicated region
        $region81: #{tpu_custom_call.1} parent=11 // pred_check
          _
        $region82: #{tpu_custom_call.1} parent=11 // pred_check_branch
          %388 = sbr.rel target = $region84
        $region83: #{tpu_custom_call.1} parent=11 // pred_region
          %389 = sst [smem:[#allocation14]] [#allocation49]
          %390 = sst [smem:[#allocation15]] [#allocation48]
        $region84: #{tpu_custom_call.1} parent=11 // pred_fallthru
          _
        %392 = shalt.err (0)
        %s394 = sshll.u32 %s384, 4
        %s395 = int_to_ptr.hbm [resolvable:$true] %s394
        %s396 = sshll.u32 %s385, 4
        %s397 = int_to_ptr.vmem [resolvable:$true] %s396
        %399 = dma.hbm_to_vmem [thread:$0]  %s395, 16, %s397, %s386
        %s400 = scalar_lea.hbm %s4, %s102
        %s401 = scalar_lea.vmem [#allocation3], 11
        %s402 = scalar_lea.sflag [#allocation5], 18
        // Predicated region
        $region85: #{tpu_custom_call.1} parent=11 // pred_check
          _
        $region86: #{tpu_custom_call.1} parent=11 // pred_check_branch
          %404 = sbr.rel target = $region88
        $region87: #{tpu_custom_call.1} parent=11 // pred_region
          %405 = sst [smem:[#allocation14]] [#allocation51]
          %406 = sst [smem:[#allocation15]] [#allocation50]
        $region88: #{tpu_custom_call.1} parent=11 // pred_fallthru
          _
        %408 = shalt.err (0)
        %s410 = sshll.u32 %s400, 4
        %s411 = int_to_ptr.hbm [resolvable:$true] %s410
        %s412 = sshll.u32 %s401, 4
        %s413 = int_to_ptr.vmem [resolvable:$true] %s412
        %415 = dma.hbm_to_vmem [thread:$0]  %s411, 16, %s413, %s402
        %s416 = scalar_lea.hbm %s4, %s104
        %s417 = scalar_lea.vmem [#allocation3], 12
        %s418 = scalar_lea.sflag [#allocation5], 19
        // Predicated region
        $region89: #{tpu_custom_call.1} parent=11 // pred_check
          _
        $region90: #{tpu_custom_call.1} parent=11 // pred_check_branch
          %420 = sbr.rel target = $region92
        $region91: #{tpu_custom_call.1} parent=11 // pred_region
          %421 = sst [smem:[#allocation14]] [#allocation53]
          %422 = sst [smem:[#allocation15]] [#allocation52]
        $region92: #{tpu_custom_call.1} parent=11 // pred_fallthru
          _
        %424 = shalt.err (0)
        %s426 = sshll.u32 %s416, 4
        %s427 = int_to_ptr.hbm [resolvable:$true] %s426
        %s428 = sshll.u32 %s417, 4
        %s429 = int_to_ptr.vmem [resolvable:$true] %s428
        %431 = dma.hbm_to_vmem [thread:$0]  %s427, 16, %s429, %s418
        %s432 = scalar_lea.hbm %s5, %s105
        %s433 = scalar_lea.vmem [#allocation4], 8
        %s434 = scalar_lea.sflag [#allocation5], 20
        // Predicated region
        $region93: #{tpu_custom_call.1} parent=11 // pred_check
          _
        $region94: #{tpu_custom_call.1} parent=11 // pred_check_branch
          %436 = sbr.rel target = $region96
        $region95: #{tpu_custom_call.1} parent=11 // pred_region
          %437 = sst [smem:[#allocation14]] [#allocation55]
          %438 = sst [smem:[#allocation15]] [#allocation54]
        $region96: #{tpu_custom_call.1} parent=11 // pred_fallthru
          _
        %440 = shalt.err (0)
        %s442 = sshll.u32 %s432, 4
        %s443 = int_to_ptr.hbm [resolvable:$true] %s442
        %s444 = sshll.u32 %s433, 4
        %s445 = int_to_ptr.vmem [resolvable:$true] %s444
        %447 = dma.hbm_to_vmem [thread:$0]  %s443, 16, %s445, %s434
        %s448 = scalar_lea.hbm %s5, %s106
        %s449 = scalar_lea.vmem [#allocation4], 9
        %s450 = scalar_lea.sflag [#allocation5], 21
        // Predicated region
        $region97: #{tpu_custom_call.1} parent=11 // pred_check
          _
        $region98: #{tpu_custom_call.1} parent=11 // pred_check_branch
          %452 = sbr.rel target = $region100
        $region99: #{tpu_custom_call.1} parent=11 // pred_region
          %453 = sst [smem:[#allocation14]] [#allocation57]
          %454 = sst [smem:[#allocation15]] [#allocation56]
        $region100: #{tpu_custom_call.1} parent=11 // pred_fallthru
          _
        %456 = shalt.err (0)
        %s458 = sshll.u32 %s448, 4
        %s459 = int_to_ptr.hbm [resolvable:$true] %s458
        %s460 = sshll.u32 %s449, 4
        %s461 = int_to_ptr.vmem [resolvable:$true] %s460
        %463 = dma.hbm_to_vmem [thread:$0]  %s459, 16, %s461, %s450
        %s464 = scalar_lea.hbm %s5, %s107
        %s465 = scalar_lea.vmem [#allocation4], 10
        %s466 = scalar_lea.sflag [#allocation5], 22
        // Predicated region
        $region101: #{tpu_custom_call.1} parent=11 // pred_check
          _
        $region102: #{tpu_custom_call.1} parent=11 // pred_check_branch
          %468 = sbr.rel target = $region104
        $region103: #{tpu_custom_call.1} parent=11 // pred_region
          %469 = sst [smem:[#allocation14]] [#allocation59]
          %470 = sst [smem:[#allocation15]] [#allocation58]
        $region104: #{tpu_custom_call.1} parent=11 // pred_fallthru
          _
        %472 = shalt.err (0)
        %s474 = sshll.u32 %s464, 4
        %s475 = int_to_ptr.hbm [resolvable:$true] %s474
        %s476 = sshll.u32 %s465, 4
        %s477 = int_to_ptr.vmem [resolvable:$true] %s476
        %479 = dma.hbm_to_vmem [thread:$0]  %s475, 16, %s477, %s466
        %s480 = scalar_lea.hbm %s5, %s108
        %s481 = scalar_lea.vmem [#allocation4], 11
        %s482 = scalar_lea.sflag [#allocation5], 23
        // Predicated region
        $region105: #{tpu_custom_call.1} parent=11 // pred_check
          _
        $region106: #{tpu_custom_call.1} parent=11 // pred_check_branch
          %484 = sbr.rel target = $region108
        $region107: #{tpu_custom_call.1} parent=11 // pred_region
          %485 = sst [smem:[#allocation14]] [#allocation61]
          %486 = sst [smem:[#allocation15]] [#allocation60]
        $region108: #{tpu_custom_call.1} parent=11 // pred_fallthru
          _
        %488 = shalt.err (0)
        %s490 = sshll.u32 %s480, 4
        %s491 = int_to_ptr.hbm [resolvable:$true] %s490
        %s492 = sshll.u32 %s481, 4
        %s493 = int_to_ptr.vmem [resolvable:$true] %s492
        %495 = dma.hbm_to_vmem [thread:$0]  %s491, 16, %s493, %s482
        %s496 = scalar_lea.hbm %s5, %s109
        %s497 = scalar_lea.vmem [#allocation4], 12
        %s498 = scalar_lea.sflag [#allocation5], 24
        // Predicated region
        $region109: #{tpu_custom_call.1} parent=11 // pred_check
          _
        $region110: #{tpu_custom_call.1} parent=11 // pred_check_branch
          %500 = sbr.rel target = $region112
        $region111: #{tpu_custom_call.1} parent=11 // pred_region
          %501 = sst [smem:[#allocation14]] [#allocation63]
          %502 = sst [smem:[#allocation15]] [#allocation62]
        $region112: #{tpu_custom_call.1} parent=11 // pred_fallthru
          _
        %504 = shalt.err (0)
        %s506 = sshll.u32 %s496, 4
        %s507 = int_to_ptr.hbm [resolvable:$true] %s506
        %s508 = sshll.u32 %s497, 4
        %s509 = int_to_ptr.vmem [resolvable:$true] %s508
        %511 = dma.hbm_to_vmem [thread:$0]  %s507, 16, %s509, %s498
        %s512 = scalar_lea.hbm %s5, %s111
        %s513 = scalar_lea.vmem [#allocation4], 13
        %s514 = scalar_lea.sflag [#allocation5], 25
        // Predicated region
        $region113: #{tpu_custom_call.1} parent=11 // pred_check
          _
        $region114: #{tpu_custom_call.1} parent=11 // pred_check_branch
          %516 = sbr.rel target = $region116
        $region115: #{tpu_custom_call.1} parent=11 // pred_region
          %517 = sst [smem:[#allocation14]] [#allocation65]
          %518 = sst [smem:[#allocation15]] [#allocation64]
        $region116: #{tpu_custom_call.1} parent=11 // pred_fallthru
          _
        %520 = shalt.err (0)
        %s522 = sshll.u32 %s512, 4
        %s523 = int_to_ptr.hbm [resolvable:$true] %s522
        %s524 = sshll.u32 %s513, 4
        %s525 = int_to_ptr.vmem [resolvable:$true] %s524
        %527 = dma.hbm_to_vmem [thread:$0]  %s523, 16, %s525, %s514
        %s528 = scalar_lea.hbm %s5, %s113
        %s529 = scalar_lea.vmem [#allocation4], 14
        %s530 = scalar_lea.sflag [#allocation5], 26
        // Predicated region
        $region117: #{tpu_custom_call.1} parent=11 // pred_check
          _
        $region118: #{tpu_custom_call.1} parent=11 // pred_check_branch
          %532 = sbr.rel target = $region120
        $region119: #{tpu_custom_call.1} parent=11 // pred_region
          %533 = sst [smem:[#allocation14]] [#allocation67]
          %534 = sst [smem:[#allocation15]] [#allocation66]
        $region120: #{tpu_custom_call.1} parent=11 // pred_fallthru
          _
        %536 = shalt.err (0)
        %s538 = sshll.u32 %s528, 4
        %s539 = int_to_ptr.hbm [resolvable:$true] %s538
        %s540 = sshll.u32 %s529, 4
        %s541 = int_to_ptr.vmem [resolvable:$true] %s540
        %543 = dma.hbm_to_vmem [thread:$0]  %s539, 16, %s541, %s530
        %s544 = scalar_lea.hbm %s5, %s115
        %s545 = scalar_lea.vmem [#allocation4], 15
        %s546 = scalar_lea.sflag [#allocation5], 27
        // Predicated region
        $region121: #{tpu_custom_call.1} parent=11 // pred_check
          _
        $region122: #{tpu_custom_call.1} parent=11 // pred_check_branch
          %548 = sbr.rel target = $region124
        $region123: #{tpu_custom_call.1} parent=11 // pred_region
          %549 = sst [smem:[#allocation14]] [#allocation69]
          %550 = sst [smem:[#allocation15]] [#allocation68]
        $region124: #{tpu_custom_call.1} parent=11 // pred_fallthru
          _
        %552 = shalt.err (0)
        %s554 = sshll.u32 %s544, 4
        %s555 = int_to_ptr.hbm [resolvable:$true] %s554
        %s556 = sshll.u32 %s545, 4
        %s557 = int_to_ptr.vmem [resolvable:$true] %s556
        %559 = dma.hbm_to_vmem [thread:$0]  %s555, 16, %s557, %s546
        %s560 = smul.u32 1, 1
        %s561 = sshll.u32 %s560, 4
        %562 = dma.done [#allocation5], %s561
        %s563 = sshll.u32 %s560, 4
        %564 = dma.done %s131, %s563
        %s565 = sshll.u32 %s560, 4
        %566 = dma.done %s147, %s565
        %s567 = sshll.u32 %s560, 4
        %568 = dma.done %s163, %s567
        %s569 = sshll.u32 %s560, 4
        %570 = dma.done %s179, %s569
        %s571 = sshll.u32 %s560, 4
        %572 = dma.done %s195, %s571
        %s573 = sshll.u32 %s560, 4
        %574 = dma.done %s210, %s573
        %s575 = sshll.u32 %s560, 4
        %576 = dma.done %s226, %s575
        %s577 = sshll.u32 %s560, 4
        %578 = dma.done %s242, %s577
        %s579 = sshll.u32 %s560, 4
        %580 = dma.done %s258, %s579
        %s581 = sshll.u32 %s560, 4
        %582 = dma.done %s274, %s581
        %s583 = sshll.u32 %s560, 4
        %584 = dma.done %s290, %s583
        %s585 = sshll.u32 %s560, 4
        %586 = dma.done %s306, %s585
        %s587 = sshll.u32 %s560, 4
        %588 = dma.done %s322, %s587
        %s589 = sshll.u32 %s560, 4
        %590 = dma.done %s338, %s589
        %s591 = sshll.u32 %s560, 4
        %592 = dma.done %s354, %s591
        %s593 = sshll.u32 %s560, 4
        %594 = dma.done %s370, %s593
        %s595 = sshll.u32 %s560, 4
        %596 = dma.done %s386, %s595
        %s597 = sshll.u32 %s560, 4
        %598 = dma.done %s402, %s597
        %s599 = sshll.u32 %s560, 4
        %600 = dma.done %s418, %s599
        %s601 = sshll.u32 %s560, 4
        %602 = dma.done %s434, %s601
        %s603 = sshll.u32 %s560, 4
        %604 = dma.done %s450, %s603
        %s605 = sshll.u32 %s560, 4
        %606 = dma.done %s466, %s605
        %s607 = sshll.u32 %s560, 4
        %608 = dma.done %s482, %s607
        %s609 = sshll.u32 %s560, 4
        %610 = dma.done %s498, %s609
        %s611 = sshll.u32 %s560, 4
        %612 = dma.done %s514, %s611
        %s613 = sshll.u32 %s560, 4
        %614 = dma.done %s530, %s613
        %s615 = sshll.u32 %s560, 4
        %616 = dma.done %s546, %s615
        %v617 = vld [vmem:[#allocation2] sm:$0x3]
        %v618 = vld [vmem:[#allocation3] sm:$0x1f]
        %v619 = vld [vmem:[#allocation3 + $0x8] sm:$0x1f]
        %vm620 = vcmask 1044480
        %v621 = vsel %vm620, %v618, 0.0
        %v622 = vrot.slane %v621, 4
        %v623 = vadd.f32 %v621, %v622
        %v624 = vrot.slane %v623, 2
        %v625 = vadd.f32 %v623, %v624
        %v626 = vrot.slane %v625, 1
        %v627 = vadd.f32 %v625, %v626
        %v628 = vsel %vm620, %v619, 0.0
        %v629 = vrot.slane %v628, 4
        %v630 = vadd.f32 %v628, %v629
        %v631 = vrot.slane %v630, 2
        %v632 = vadd.f32 %v630, %v631
        %v633 = vrot.slane %v632, 1
        %v634 = vadd.f32 %v632, %v633
        %vm637 = vcmask 1041409
        %v638 = vsel %vm637, %v634, %v627
        %v640 = vadd.f32 %v617, %v638
        %v642 = vrot.slane %v640, 1
        %v643 = vld [vmem:[#allocation4] sm:$0xff]
        %v644 = vld [vmem:[#allocation4 + $0x8] sm:$0xff]
        %v645 = vperm.slane %v640, 0
        %v646 = vperm.slane %v642, 0
        %v649 = vmul.f32 %v645, %v643
        %v650 = vmul.f32 %v646, %v644
        %651 = vadd.xlane.f32.xlu0 %v649
        %v652 = vpop.xlane.xlu0 %651
        %653 = vadd.xlane.f32.xlu0 %v650
        %v654 = vpop.xlane.xlu0 %653
        %v657 = vlaneseq
        %v658 = vand.u32 %v657, 127
        %v659 = vperm.slane %v652, %v658
        %v660 = vperm.slane %v654, %v658
        %v661 = vsel %vm637, %v660, %v659
        %vm663 = vcmask 58368
        %664 = vst.msk [vmem:[%s69] sm:$0x3] %vm663, %v661
        %s665 = sand.u32 %s42, 1
        %s666 = scalar_lea.sflag [#allocation11], %s665
        %s667 = sand.u32 %s42, 1
        %s668 = smul.addr %s667, 2
        %s669 = scalar_lea.vmem [#allocation10], %s668
        // Predicated region
        $region125: #{tpu_custom_call.1} parent=11 // pred_check
          %p670 = pneg %p48
        $region126: #{tpu_custom_call.1} parent=11 // pred_check_branch
          %672 = sbr.rel (%p670) target = $region128
        $region127: #{tpu_custom_call.1} parent=11 // pred_region
          %674 = vsyncadd %s666, 0
          %s675 = smul.addr %s33, 2
          %s676 = scalar_lea.hbm %s6, %s675
          %s678 = sshll.u32 %s669, 4
          %s679 = int_to_ptr.vmem [resolvable:$true] %s678
          %s680 = sshll.u32 %s676, 4
          %s681 = int_to_ptr.hbm [resolvable:$true] %s680
          %683 = dma.vmem_to_hbm [thread:$0]  %s679, 32, %s681, %s666
        $region128: #{tpu_custom_call.1} parent=11 // pred_fallthru
          _
      $region12: #{tpu_custom_call.1} parent=5 // pred_fallthru
        _
      %p684 = scmp.le.s32.totalorder 1, %s33
      // Predicated region
      $region129: #{tpu_custom_call.1} parent=5 // pred_check
        %p685 = pneg %p684
      $region130: #{tpu_custom_call.1} parent=5 // pred_check_branch
        %687 = sbr.rel (%p685) target = $region132
      $region131: #{tpu_custom_call.1} parent=5 // pred_region
        %s688 = ssub.s32 %s33, 1
        // Predicated region
        $region133: #{tpu_custom_call.1} parent=131 // pred_check
          %p689 = pneg %p54
        $region134: #{tpu_custom_call.1} parent=131 // pred_check_branch
          %691 = sbr.rel (%p689) target = $region136
        $region135: #{tpu_custom_call.1} parent=131 // pred_region
          %s692 = sand.u32 %s45, 1
          %s693 = scalar_lea.sflag [#allocation11], %s692
          %s694 = sand.u32 %s45, 1
          %s695 = smul.addr %s694, 2
          %s696 = scalar_lea.vmem [#allocation10], %s695
          %698 = dma.done %s693, 32
        $region136: #{tpu_custom_call.1} parent=131 // pred_fallthru
          _
      $region132: #{tpu_custom_call.1} parent=5 // pred_fallthru
        _
    $region6: #{tpu_custom_call.1} parent=1 // loop_footer
      %s37 = sadd.s32 1, %s33
    $region7: #{tpu_custom_call.1} parent=1 // loop_footer_branch
      %32 = sbr.rel target = $region3
    $region8: #{tpu_custom_call.1} parent=1 // loop_exit
      _
    %699 = vsyncpa [#allocation11], 1
    %s700 = scalar_lea.sflag [#allocation11], 1
    %701 = vsyncpa %s700, 1
  %702 = vsyncmov [#allocation5]
  %s703 = vpop.sfrf %702
  %p704 = scmp.eq.s32.totalorder %s703, 0
  %p705 = pneg %p704
  %707 = shalt.err (%p705)
  %s708 = scalar_lea.sflag [#allocation5], 1
  %709 = vsyncmov %s708
  %s710 = vpop.sfrf %709
  %p711 = scmp.eq.s32.totalorder %s710, 0
  %p712 = pneg %p711
  %714 = shalt.err (%p712)
  %s715 = scalar_lea.sflag [#allocation5], 2
  %716 = vsyncmov %s715
  %s717 = vpop.sfrf %716
  %p718 = scmp.eq.s32.totalorder %s717, 0
  %p719 = pneg %p718
  %721 = shalt.err (%p719)
  %s722 = scalar_lea.sflag [#allocation5], 3
  %723 = vsyncmov %s722
  %s724 = vpop.sfrf %723
  %p725 = scmp.eq.s32.totalorder %s724, 0
  %p726 = pneg %p725
  %728 = shalt.err (%p726)
  %s729 = scalar_lea.sflag [#allocation5], 4
  %730 = vsyncmov %s729
  %s731 = vpop.sfrf %730
  %p732 = scmp.eq.s32.totalorder %s731, 0
  %p733 = pneg %p732
  %735 = shalt.err (%p733)
  %s736 = scalar_lea.sflag [#allocation5], 5
  %737 = vsyncmov %s736
  %s738 = vpop.sfrf %737
  %p739 = scmp.eq.s32.totalorder %s738, 0
  %p740 = pneg %p739
  %742 = shalt.err (%p740)
  %s743 = scalar_lea.sflag [#allocation5], 6
  %744 = vsyncmov %s743
  %s745 = vpop.sfrf %744
  %p746 = scmp.eq.s32.totalorder %s745, 0
  %p747 = pneg %p746
  %749 = shalt.err (%p747)
  %s750 = scalar_lea.sflag [#allocation5], 7
  %751 = vsyncmov %s750
  %s752 = vpop.sfrf %751
  %p753 = scmp.eq.s32.totalorder %s752, 0
  %p754 = pneg %p753
  %756 = shalt.err (%p754)
  %s757 = scalar_lea.sflag [#allocation5], 8
  %758 = vsyncmov %s757
  %s759 = vpop.sfrf %758
  %p760 = scmp.eq.s32.totalorder %s759, 0
  %p761 = pneg %p760
  %763 = shalt.err (%p761)
  %s764 = scalar_lea.sflag [#allocation5], 9
  %765 = vsyncmov %s764
  %s766 = vpop.sfrf %765
  %p767 = scmp.eq.s32.totalorder %s766, 0
  %p768 = pneg %p767
  %770 = shalt.err (%p768)
  %s771 = scalar_lea.sflag [#allocation5], 10
  %772 = vsyncmov %s771
  %s773 = vpop.sfrf %772
  %p774 = scmp.eq.s32.totalorder %s773, 0
  %p775 = pneg %p774
  %777 = shalt.err (%p775)
  %s778 = scalar_lea.sflag [#allocation5], 11
  %779 = vsyncmov %s778
  %s780 = vpop.sfrf %779
  %p781 = scmp.eq.s32.totalorder %s780, 0
  %p782 = pneg %p781
  %784 = shalt.err (%p782)
  %s785 = scalar_lea.sflag [#allocation5], 12
  %786 = vsyncmov %s785
  %s787 = vpop.sfrf %786
  %p788 = scmp.eq.s32.totalorder %s787, 0
  %p789 = pneg %p788
  %791 = shalt.err (%p789)
  %s792 = scalar_lea.sflag [#allocation5], 13
  %793 = vsyncmov %s792
  %s794 = vpop.sfrf %793
  %p795 = scmp.eq.s32.totalorder %s794, 0
  %p796 = pneg %p795
  %798 = shalt.err (%p796)
  %s799 = scalar_lea.sflag [#allocation5], 14
  %800 = vsyncmov %s799
  %s801 = vpop.sfrf %800
  %p802 = scmp.eq.s32.totalorder %s801, 0
  %p803 = pneg %p802
  %805 = shalt.err (%p803)
  %s806 = scalar_lea.sflag [#allocation5], 15
  %807 = vsyncmov %s806
  %s808 = vpop.sfrf %807
  %p809 = scmp.eq.s32.totalorder %s808, 0
  %p810 = pneg %p809
  %812 = shalt.err (%p810)
  %s813 = scalar_lea.sflag [#allocation5], 16
  %814 = vsyncmov %s813
  %s815 = vpop.sfrf %814
  %p816 = scmp.eq.s32.totalorder %s815, 0
  %p817 = pneg %p816
  %819 = shalt.err (%p817)
  %s820 = scalar_lea.sflag [#allocation5], 17
  %821 = vsyncmov %s820
  %s822 = vpop.sfrf %821
  %p823 = scmp.eq.s32.totalorder %s822, 0
  %p824 = pneg %p823
  %826 = shalt.err (%p824)
  %s827 = scalar_lea.sflag [#allocation5], 18
  %828 = vsyncmov %s827
  %s829 = vpop.sfrf %828
  %p830 = scmp.eq.s32.totalorder %s829, 0
  %p831 = pneg %p830
  %833 = shalt.err (%p831)
  %s834 = scalar_lea.sflag [#allocation5], 19
  %835 = vsyncmov %s834
  %s836 = vpop.sfrf %835
  %p837 = scmp.eq.s32.totalorder %s836, 0
  %p838 = pneg %p837
  %840 = shalt.err (%p838)
  %s841 = scalar_lea.sflag [#allocation5], 20
  %842 = vsyncmov %s841
  %s843 = vpop.sfrf %842
  %p844 = scmp.eq.s32.totalorder %s843, 0
  %p845 = pneg %p844
  %847 = shalt.err (%p845)
  %s848 = scalar_lea.sflag [#allocation5], 21
  %849 = vsyncmov %s848
  %s850 = vpop.sfrf %849
  %p851 = scmp.eq.s32.totalorder %s850, 0
  %p852 = pneg %p851
  %854 = shalt.err (%p852)
  %s855 = scalar_lea.sflag [#allocation5], 22
  %856 = vsyncmov %s855
  %s857 = vpop.sfrf %856
  %p858 = scmp.eq.s32.totalorder %s857, 0
  %p859 = pneg %p858
  %861 = shalt.err (%p859)
  %s862 = scalar_lea.sflag [#allocation5], 23
  %863 = vsyncmov %s862
  %s864 = vpop.sfrf %863
  %p865 = scmp.eq.s32.totalorder %s864, 0
  %p866 = pneg %p865
  %868 = shalt.err (%p866)
  %s869 = scalar_lea.sflag [#allocation5], 24
  %870 = vsyncmov %s869
  %s871 = vpop.sfrf %870
  %p872 = scmp.eq.s32.totalorder %s871, 0
  %p873 = pneg %p872
  %875 = shalt.err (%p873)
  %s876 = scalar_lea.sflag [#allocation5], 25
  %877 = vsyncmov %s876
  %s878 = vpop.sfrf %877
  %p879 = scmp.eq.s32.totalorder %s878, 0
  %p880 = pneg %p879
  %882 = shalt.err (%p880)
  %s883 = scalar_lea.sflag [#allocation5], 26
  %884 = vsyncmov %s883
  %s885 = vpop.sfrf %884
  %p886 = scmp.eq.s32.totalorder %s885, 0
  %p887 = pneg %p886
  %889 = shalt.err (%p887)
  %s890 = scalar_lea.sflag [#allocation5], 27
  %891 = vsyncmov %s890
  %s892 = vpop.sfrf %891
  %p893 = scmp.eq.s32.totalorder %s892, 0
  %p894 = pneg %p893
  %896 = shalt.err (%p894)

</llo_original>
